<compile_context>
chip_gen: v7x
topology: tpu7x:2x2x1
jax: 0.10.0
libtpu: 0.0.40
codegen_flags: <defaults>
</compile_context>

<pallas_src>
import functools

import jax
import jax.numpy as jnp
from jax import lax
from jax.experimental import pallas as pl
from jax.experimental.pallas import tpu as pltpu


def _round_up(x, m):
    return (x + m - 1) // m * m


def _recognizer_kernel(*refs, inv_hw, num_hw_tiles, training):
    # TODO(synk): the real torchvision backbone (resnet/vit/...) has no direct
    # Pallas equivalent; a pointwise-conv + ReLU + GAP stem stands in for it.
    if training:
        x_ref, wct_ref, wnt_ref, logits_ref, acc_ref = refs
    else:
        x_ref, wct_ref, emb_ref, acc_ref = refs
        wnt_ref = logits_ref = None

    t = pl.program_id(1)

    @pl.when(t == 0)
    def _init():
        acc_ref[...] = jnp.zeros_like(acc_ref)

    # ---- backbone stem on the MXU: pointwise conv (C -> E_pad) -------------
    # wct: [E_pad, C] bf16, x tile: [C, T_HW] bf16 -> h: [E_pad, T_HW] f32.
    # Lane axis is HW (multiple of 128) -> dense vregs / dense loads.
    h = jnp.dot(wct_ref[...], x_ref[0], preferred_element_type=jnp.float32)
    h = jnp.maximum(h, 0.0)                                   # ReLU (f32)
    # Partial global-average-pool: accumulate the sum over this HW tile.
    acc_ref[...] += jnp.sum(h, axis=1, keepdims=True)         # [E_pad, 1]

    @pl.when(t == num_hw_tiles - 1)
    def _finalize():
        gap = acc_ref[...] * inv_hw                           # [E_pad, 1]
        # L2-normalize the embedding: x * rsqrt(sum(x^2))  (rsqrt -> EUP).
        ssq = jnp.sum(gap * gap, axis=0, keepdims=True)       # [1, 1]
        emb_col = gap * lax.rsqrt(ssq)                        # [E_pad, 1]
        # Column -> lane-dense row without a relayout transpose: mask with an
        # identity built from 2-D iotas and reduce over sublanes (cheap, and
        # only runs once per batch element).
        e_pad = emb_col.shape[0]
        rows = lax.broadcasted_iota(jnp.int32, (e_pad, e_pad), 0)
        cols = lax.broadcasted_iota(jnp.int32, (e_pad, e_pad), 1)
        eye = (rows == cols).astype(jnp.float32)
        emb_row = jnp.sum(emb_col * eye, axis=0, keepdims=True)  # [1, E_pad]
        if training:
            # Bias-free classifier on row-normalized weights (normalized and
            # transposed/padded in the wrapper): [1, E_pad] @ [E_pad, K_pad].
            logits_ref[0] = jnp.dot(
                emb_row, wnt_ref[...],
                precision=lax.Precision.HIGHEST,
                preferred_element_type=jnp.float32,
            ).astype(logits_ref.dtype)
        else:
            emb_ref[0] = emb_row.astype(emb_ref.dtype)


def recognizer_forward(x_nchw, conv_w, clf_w, *, training=True):
    """x_nchw: [N, C, H, W]; conv_w: [C, E]; clf_w: [num_classes, E]."""
    n, c, h, w = x_nchw.shape
    e = conv_w.shape[1]
    k = clf_w.shape[0]
    hw = h * w

    e_pad = _round_up(e, 128)
    k_pad = _round_up(k, 128)
    # HW tile: lane-dense (multiple of 128), capped so the [E_pad, T_HW] f32
    # intermediate plus double-buffered bf16 x tiles stay far below the 32 MiB
    # scoped-VMEM request (safe on v5e/v6e 128 MiB and v7x 64 MiB VMEM).
    t_hw = min(_round_up(hw, 128), 512)
    hw_pad = _round_up(hw, t_hw)
    num_hw_tiles = hw_pad // t_hw

    # NCHW -> [N, C, HW] is a FREE reshape (no transpose / extra HBM pass).
    x3 = x_nchw.reshape(n, c, hw)
    if hw_pad != hw:
        # zero-padded columns: relu(W^T @ 0) = 0, GAP (divide by true HW) unaffected.
        x3 = jnp.pad(x3, ((0, 0), (0, 0), (0, hw_pad - hw)))
    x3 = x3.astype(jnp.bfloat16)

    # Pointwise-conv weight, transposed to [E_pad, C] with zero-padded rows.
    wct = jnp.zeros((e_pad, c), jnp.bfloat16).at[:e, :].set(
        conv_w.T.astype(jnp.bfloat16))

    kernel = functools.partial(
        _recognizer_kernel, inv_hw=1.0 / float(hw),
        num_hw_tiles=num_hw_tiles, training=training)

    x_spec = pl.BlockSpec((1, c, t_hw), lambda b, t: (b, 0, t))
    wct_spec = pl.BlockSpec((e_pad, c), lambda b, t: (0, 0))

    flops = 2 * n * hw_pad * c * e_pad + (2 * n * e_pad * k_pad if training else 0)
    bytes_accessed = (x3.size * 2 + wct.size * 2
                      + (e_pad * k_pad * 4 + n * k_pad * 4 if training
                         else n * e_pad * 4))
    cost = pl.CostEstimate(flops=flops, transcendentals=n,
                           bytes_accessed=bytes_accessed)

    cparams = pltpu.CompilerParams(
        dimension_semantics=("parallel", "arbitrary"),   # batch across TCs (v7x)
        vmem_limit_bytes=32 * 1024 * 1024,
    )
    scratch = [pltpu.VMEM((e_pad, 1), jnp.float32)]      # GAP accumulator

    if training:
        # Classifier-row L2 normalization is a pure weight transform: do it once
        # in the wrapper, then pad with zeros and transpose to [E_pad, K_pad].
        clf_n = clf_w / jnp.linalg.norm(clf_w, axis=1, keepdims=True)
        wnt = jnp.zeros((e_pad, k_pad), jnp.float32).at[:e, :k].set(
            clf_n.T.astype(jnp.float32))
        logits = pl.pallas_call(
            kernel,
            grid=(n, num_hw_tiles),
            in_specs=[x_spec, wct_spec,
                      pl.BlockSpec((e_pad, k_pad), lambda b, t: (0, 0))],
            out_specs=pl.BlockSpec((1, 1, k_pad), lambda b, t: (b, 0, 0)),
            out_shape=jax.ShapeDtypeStruct((n, 1, k_pad), jnp.float32),
            scratch_shapes=scratch,
            compiler_params=cparams,
            cost_estimate=cost,
        )(x3, wct, wnt)
        return logits[:, 0, :k]

    # Eval path: no classifier input, weight normalization or logits matmul.
    emb = pl.pallas_call(
        kernel,
        grid=(n, num_hw_tiles),
        in_specs=[x_spec, wct_spec],
        out_specs=pl.BlockSpec((1, 1, e_pad), lambda b, t: (b, 0, 0)),
        out_shape=jax.ShapeDtypeStruct((n, 1, e_pad), jnp.float32),
        scratch_shapes=scratch,
        compiler_params=cparams,
        cost_estimate=cost,
    )(x3, wct)
    return emb[:, 0, :e]


def _reference(x_nchw, conv_w, clf_w, training=True):
    n, c, h, w = x_nchw.shape
    hw = h * w
    # Match the kernel's bf16 rounding of the stem inputs; accumulate in f32.
    xb = x_nchw.reshape(n, c, hw).astype(jnp.bfloat16).astype(jnp.float32)
    wcb = conv_w.astype(jnp.bfloat16).astype(jnp.float32)
    feat = jnp.maximum(
        jnp.einsum("nct,ce->nte", xb, wcb, precision=lax.Precision.HIGHEST), 0.0)
    emb = feat.mean(axis=1)                                   # GAP -> [N, E]
    emb = emb / jnp.linalg.norm(emb, axis=1, keepdims=True)
    if not training:
        return emb
    wn = clf_w / jnp.linalg.norm(clf_w, axis=1, keepdims=True)
    return jnp.matmul(emb, wn.T, precision=lax.Precision.HIGHEST)


if __name__ == "__main__":
    key = jax.random.PRNGKey(0)
    k_x, k_wc, k_wclf = jax.random.split(key, 3)

    N, C, H, W = 2, 4, 16, 16     # batch of small NCHW images
    E = 32                        # embedding dim
    NUM_CLASSES = 8

    x = jax.random.normal(k_x, (N, C, H, W), dtype=jnp.float32)
    conv_w = jax.random.normal(k_wc, (C, E), dtype=jnp.float32) * 0.1
    clf_w = jax.random.normal(k_wclf, (NUM_CLASSES, E), dtype=jnp.float32) * 0.1

    # training path: logits
    logits = jax.block_until_ready(recognizer_forward(x, conv_w, clf_w, training=True))
    # eval path: normalized embeddings
    emb = jax.block_until_ready(recognizer_forward(x, conv_w, clf_w, training=False))

    ref_logits = _reference(x, conv_w, clf_w, training=True)
    ref_emb = _reference(x, conv_w, clf_w, training=False)
    assert logits.shape == (N, NUM_CLASSES)
    assert emb.shape == (N, E)
    assert jnp.allclose(emb, ref_emb, atol=1e-4, rtol=1e-4)
    assert jnp.allclose(logits, ref_logits, atol=1e-2, rtol=1e-2)

    print("KERNEL_OK")
</pallas_src>

<mosaic_0001>
module attributes {stable_mosaic.version = 11 : i64} {
  func.func @_recognizer_kernel(%arg0: i32, %arg1: i32, %arg2: memref<1x4x256xbf16, #tpu.memory_space<vmem>>, %arg3: memref<128x4xbf16, #tpu.memory_space<vmem>>, %arg4: memref<128x128xf32, #tpu.memory_space<vmem>>, %arg5: memref<1x1x128xf32, #tpu.memory_space<vmem>>, %arg6: memref<128x1xf32, #tpu.memory_space<vmem>>) attributes {dimension_semantics = [#tpu.dimension_semantics<parallel>, #tpu.dimension_semantics<arbitrary>], iteration_bounds = array<i64: 2, 1>, scalar_prefetch = 0 : i64, scratch_operands = 1 : i64, tpu.core_type = #tpu.core_type<tc>, window_params = [{transform_indices = @transform_0, window_bounds = array<i64: 1, 4, 256>}, {pipeline_mode = #tpu.pipeline_mode<synchronous>, transform_indices = @transform_1, window_bounds = array<i64: 128, 4>}, {pipeline_mode = #tpu.pipeline_mode<synchronous>, transform_indices = @transform_2, window_bounds = array<i64: 128, 128>}, {transform_indices = @transform_3, window_bounds = array<i64: 1, 1, 128>}]} {
    %c0_i32 = arith.constant 0 : i32
    %0 = arith.cmpi eq, %arg1, %c0_i32 : i32
    %1 = arith.extui %0 : i1 to i32
    %c0_i32_0 = arith.constant 0 : i32
    %2 = arith.cmpi ne, %1, %c0_i32_0 : i32
    scf.if %2 {
      %cst_13 = arith.constant 0.000000e+00 : f32
      %17 = vector.broadcast %cst_13 : f32 to vector<128x1xf32>
      %c0_14 = arith.constant 0 : index
      %c0_15 = arith.constant 0 : index
      %18 = vector.load %arg6[%c0_14, %c0_15] : memref<128x1xf32, #tpu.memory_space<vmem>>, vector<128x1xf32>
      tpu.vector_store %arg6[%c0_14, %c0_15], %17 {strides = array<i32>} : memref<128x1xf32, #tpu.memory_space<vmem>>, vector<128x1xf32>,
    } else {
    }
    %c0 = arith.constant 0 : index
    %c0_1 = arith.constant 0 : index
    %3 = vector.load %arg3[%c0, %c0_1] : memref<128x4xbf16, #tpu.memory_space<vmem>>, vector<128x4xbf16>
    %c0_2 = arith.constant 0 : index
    %c0_3 = arith.constant 0 : index
    %c0_4 = arith.constant 0 : index
    %4 = vector.load %arg2[%c0_2, %c0_3, %c0_4] : memref<1x4x256xbf16, #tpu.memory_space<vmem>>, vector<1x4x256xbf16>
    %5 = vector.shape_cast %4 : vector<1x4x256xbf16> to vector<4x256xbf16>
    %cst = arith.constant dense<0.000000e+00> : vector<128x256xf32>
    %6 = tpu.matmul %3, %5, %cst {dimension_numbers = #tpu.dot_dimension_numbers<[1], [0], [0], [1], [0, 0, 1, 1], [], []>} : vector<128x4xbf16>, vector<4x256xbf16>, vector<128x256xf32> -> vector<128x256xf32>
    %cst_5 = arith.constant 0.000000e+00 : f32
    %7 = vector.broadcast %cst_5 : f32 to vector<128x256xf32>
    %8 = arith.maximumf %6, %7 : vector<128x256xf32>
    %c0_6 = arith.constant 0 : index
    %c0_7 = arith.constant 0 : index
    %9 = vector.load %arg6[%c0_6, %c0_7] : memref<128x1xf32, #tpu.memory_space<vmem>>, vector<128x1xf32>
    %cst_8 = arith.constant dense<0.000000e+00> : vector<128xf32>
    %10 = vector.multi_reduction <add>, %8, %cst_8 [1] : vector<128x256xf32> to vector<128xf32>
    %11 = vector.shape_cast %10 : vector<128xf32> to vector<128x1xf32>
    %12 = arith.addf %9, %11 : vector<128x1xf32>
    %c0_9 = arith.constant 0 : index
    %c0_10 = arith.constant 0 : index
    %13 = vector.load %arg6[%c0_9, %c0_10] : memref<128x1xf32, #tpu.memory_space<vmem>>, vector<128x1xf32>
    tpu.vector_store %arg6[%c0_9, %c0_10], %12 {strides = array<i32>} : memref<128x1xf32, #tpu.memory_space<vmem>>, vector<128x1xf32>,
    %c0_i32_11 = arith.constant 0 : i32
    %14 = arith.cmpi eq, %arg1, %c0_i32_11 : i32
    %15 = arith.extui %14 : i1 to i32
    %c0_i32_12 = arith.constant 0 : i32
    %16 = arith.cmpi ne, %15, %c0_i32_12 : i32
    scf.if %16 {
      %c0_13 = arith.constant 0 : index
      %c0_14 = arith.constant 0 : index
      %17 = vector.load %arg6[%c0_13, %c0_14] : memref<128x1xf32, #tpu.memory_space<vmem>>, vector<128x1xf32>
      %cst_15 = arith.constant 3.906250e-03 : f32
      %18 = vector.broadcast %cst_15 : f32 to vector<128x1xf32>
      %19 = arith.mulf %17, %18 : vector<128x1xf32>
      %20 = arith.mulf %19, %19 : vector<128x1xf32>
      %cst_16 = arith.constant dense<0.000000e+00> : vector<1xf32>
      %21 = vector.multi_reduction <add>, %20, %cst_16 [0] : vector<128x1xf32> to vector<1xf32>
      %22 = vector.shape_cast %21 : vector<1xf32> to vector<1x1xf32>
      %23 = math.rsqrt %22 : vector<1x1xf32>
      %24 = vector.broadcast %23 : vector<1x1xf32> to vector<128x1xf32>
      %25 = arith.mulf %19, %24 : vector<128x1xf32>
      %26 = tpu.iota {dimensions = array<i32: 0>} : vector<128x128xi32>
      %27 = tpu.iota {dimensions = array<i32: 1>} : vector<128x128xi32>
      %28 = arith.cmpi eq, %26, %27 : vector<128x128xi32>
      %29 = arith.extui %28 : vector<128x128xi1> to vector<128x128xi32>
      %30 = arith.sitofp %29 : vector<128x128xi32> to vector<128x128xf32>
      %31 = vector.broadcast %25 : vector<128x1xf32> to vector<128x128xf32>
      %32 = arith.mulf %31, %30 : vector<128x128xf32>
      %cst_17 = arith.constant dense<0.000000e+00> : vector<128xf32>
      %33 = vector.multi_reduction <add>, %32, %cst_17 [0] : vector<128x128xf32> to vector<128xf32>
      %34 = vector.shape_cast %33 : vector<128xf32> to vector<1x128xf32>
      %c0_18 = arith.constant 0 : index
      %c0_19 = arith.constant 0 : index
      %35 = vector.load %arg4[%c0_18, %c0_19] : memref<128x128xf32, #tpu.memory_space<vmem>>, vector<128x128xf32>
      %cst_20 = arith.constant dense<0.000000e+00> : vector<1x128xf32>
      %36 = tpu.matmul %34, %35, %cst_20 {dimension_numbers = #tpu.dot_dimension_numbers<[1], [0], [0], [1], [0, 0, 1, 1], [], []>, precision = #tpu.contract_precision<fp32>} : vector<1x128xf32>, vector<128x128xf32>, vector<1x128xf32> -> vector<1x128xf32>
      %c0_21 = arith.constant 0 : index
      %c0_22 = arith.constant 0 : index
      %c0_23 = arith.constant 0 : index
      %37 = vector.load %arg5[%c0_21, %c0_22, %c0_23] : memref<1x1x128xf32, #tpu.memory_space<vmem>>, vector<1x1x128xf32>
      %38 = vector.shape_cast %37 : vector<1x1x128xf32> to vector<1x128xf32>
      %39 = vector.shape_cast %36 : vector<1x128xf32> to vector<1x1x128xf32>
      tpu.vector_store %arg5[%c0_21, %c0_22, %c0_23], %39 {strides = array<i32>} : memref<1x1x128xf32, #tpu.memory_space<vmem>>, vector<1x1x128xf32>,
    } else {
    }
    return
  }
  func.func @transform_0(%arg0: i32, %arg1: i32) -> (i32, i32, i32) {
    %c0_i32 = arith.constant 0 : i32
    %c0_i32_0 = arith.constant 0 : i32
    return %arg0, %c0_i32, %arg1 : i32, i32, i32
  }
  func.func @transform_1(%arg0: i32, %arg1: i32) -> (i32, i32) {
    %c0_i32 = arith.constant 0 : i32
    %c0_i32_0 = arith.constant 0 : i32
    %c0_i32_1 = arith.constant 0 : i32
    return %c0_i32, %c0_i32_0 : i32, i32
  }
  func.func @transform_2(%arg0: i32, %arg1: i32) -> (i32, i32) {
    %c0_i32 = arith.constant 0 : i32
    %c0_i32_0 = arith.constant 0 : i32
    %c0_i32_1 = arith.constant 0 : i32
    return %c0_i32, %c0_i32_0 : i32, i32
  }
  func.func @transform_3(%arg0: i32, %arg1: i32) -> (i32, i32, i32) {
    %c0_i32 = arith.constant 0 : i32
    %c0_i32_0 = arith.constant 0 : i32
    %c0_i32_1 = arith.constant 0 : i32
    return %arg0, %c0_i32, %c0_i32_0 : i32, i32, i32
  }
}

</mosaic_0001>

<llo_original>
// kernel: tpu_custom_call.1
$region0: #{tpu_custom_call.1}
  #allocation0 [shape = 'u32[]', space=smem, size = 0x4, offset = 0x4, fixed_abs, tag = 'smem constant byte address 0x4 - core index']
  #allocation1 [shape = 'u32[144,128]{1,0:T(1,128)}', space=vmem, size = 0x12000, scoped, tag = 'internal scratch']
  #allocation2 [shape = 'f32[128,1]{1,0:T(8,128)}', space=vmem, size = 0x10000, scoped, tag = 'scratch operand']
  %s0 = inlined_call_operand.vmem [shape: bf16[2,4,256], index: 0, kind: input, shape index: {}]
  %s1 = inlined_call_operand.vmem [shape: bf16[128,4], index: 1, kind: input, shape index: {}]
  %s2 = inlined_call_operand.hbm [shape: f32[128,128], index: 2, kind: input, shape index: {}]
  %s3 = inlined_call_operand.hbm [shape: f32[2,1,128], index: 3, kind: output, shape index: {}]
  %s4 = sld [smem:[#allocation0]]
  $region57: #{tpu_custom_call.1} parent=0
    _
  %s6 = ssub.s32 1, %s4
  %s7 = scalar_select 0, %s6, %s4
  $region1: #{tpu_custom_call.1} parent=0
    #allocation3 [shape = 'u8[65536]{0}', space=vmem, size = 0x10000, scoped, tag = 'input window, operand 2, single buffered']
    #allocation4 [shape = 's32[2]{0}', space=sflag, size = 0x8, scoped, tag = 'scoped memory for tpu_custom_call.1']
    #allocation5 [shape = 's32[2]{0}', space=sflag, size = 0x8, scoped, tag = 'scoped memory for tpu_custom_call.1']
    #allocation6 [shape = 'u8[1024]{0}', space=vmem, size = 0x400, scoped, tag = 'output window, operand 0']
    %8 = vsyncpa [#allocation4], 0
    %9 = vsyncpa [#allocation5], 0
    %s10 = scalar_lea.sflag [#allocation5], 1
    %11 = vsyncpa %s10, 0
    loop: start=0, step=1, limit=4
    $region2: #{tpu_custom_call.1} parent=1 // loop_pre_header
      _
    $region3: #{tpu_custom_call.1} parent=1 // loop_header
      %s13 = sphi 0, %s17
      %p14 = scmp.ge.s32.totalorder %s13, 4
      %s20 = sphi 0, %s32
      %s21 = sphi 0, %s28
      %s22 = sphi 0, %s20
      %s23 = sphi 0, %s21
      %s24 = sphi 0, %s22
      %s25 = sphi 0, %s23
      %s37 = sphi 0, %s39
      %s40 = sphi 0, %s37
      %s41 = sphi 0, %s40
      %s57 = sphi 0, %s41
      %s61 = sphi 0, %s61
      %s63 = sphi 0, %s61
      %s64 = sphi 0, %s63
      %s78 = sphi 0, %s64
      %s82 = sphi 0, %s82
      %s84 = sphi 0, %s82
      %s85 = sphi 0, %s84
      %s99 = sphi 0, %s85
      %s105 = sphi 0, %s107
      %s108 = sphi 0, %s105
      %s109 = sphi 0, %s108
      %s125 = sphi 0, %s109
    $region4: #{tpu_custom_call.1} parent=1 // loop_header_branch
      %16 = sbr.rel (%p14) target = $region8
    $region5: #{tpu_custom_call.1} parent=1 // loop_body
      %s18 = ssub.s32 %s13, 1
      %s19 = ssub.s32 %s13, 2
      %s26 = sadd.s32 1, %s21
      %p27 = scmp.ge.s32.totalorder %s26, 1
      %s28 = scalar_select %p27, 0, %s26
      %s29 = sadd.s32 1, %s20
      %s30 = scalar_select %p27, %s29, %s20
      %p31 = scmp.ge.s32.totalorder %s30, 2
      %s32 = scalar_select %p31, 0, %s30
      %s33 = ssub.s32 %s20, %s32
      %s34 = ssub.s32 %s21, %s28
      %s35 = sor.u32 %s33, %s34
      %p36 = scmp.eq.s32.totalorder %s35, 0
      %s38 = sadd.s32 %s37, 1
      %s39 = scalar_select %p36, %s37, %s38
      %p42 = pneg %p36
      %p43 = scmp.eq.s32.totalorder %s13, 1
      %p44 = por %p42, %p43
      %p45 = scmp.ne.s32.totalorder %s37, %s40
      %p46 = scmp.eq.s32.totalorder %s13, 0
      %p47 = por %p45, %p46
      %p48 = scmp.ne.s32.totalorder %s37, %s40
      %p49 = scmp.eq.s32.totalorder %s18, 1
      %p50 = por %p48, %p49
      %p51 = scmp.ne.s32.totalorder %s40, %s41
      %p52 = scmp.eq.s32.totalorder %s18, 0
      %p53 = por %p51, %p52
      %p54 = scmp.ne.s32.totalorder %s40, %s41
      %p55 = scmp.eq.s32.totalorder %s19, 1
      %p56 = por %p54, %p55
      %p58 = scmp.ne.s32.totalorder %s41, %s57
      %p59 = scmp.eq.s32.totalorder %s19, 0
      %p60 = por %p58, %p59
      %s62 = sadd.s32 %s61, 1
      %p65 = scmp.eq.s32.totalorder %s13, 1
      %p66 = scmp.ne.s32.totalorder %s61, %s63
      %p67 = scmp.eq.s32.totalorder %s13, 0
      %p68 = por %p66, %p67
      %p69 = scmp.ne.s32.totalorder %s61, %s63
      %p70 = scmp.eq.s32.totalorder %s18, 1
      %p71 = por %p69, %p70
      %p72 = scmp.ne.s32.totalorder %s63, %s64
      %p73 = scmp.eq.s32.totalorder %s18, 0
      %p74 = por %p72, %p73
      %p75 = scmp.ne.s32.totalorder %s63, %s64
      %p76 = scmp.eq.s32.totalorder %s19, 1
      %p77 = por %p75, %p76
      %p79 = scmp.ne.s32.totalorder %s64, %s78
      %p80 = scmp.eq.s32.totalorder %s19, 0
      %p81 = por %p79, %p80
      %s83 = sadd.s32 %s82, 1
      %p86 = scmp.eq.s32.totalorder %s13, 1
      %p87 = scmp.ne.s32.totalorder %s82, %s84
      %p88 = scmp.eq.s32.totalorder %s13, 0
      %p89 = por %p87, %p88
      %p90 = scmp.ne.s32.totalorder %s82, %s84
      %p91 = scmp.eq.s32.totalorder %s18, 1
      %p92 = por %p90, %p91
      %p93 = scmp.ne.s32.totalorder %s84, %s85
      %p94 = scmp.eq.s32.totalorder %s18, 0
      %p95 = por %p93, %p94
      %p96 = scmp.ne.s32.totalorder %s84, %s85
      %p97 = scmp.eq.s32.totalorder %s19, 1
      %p98 = por %p96, %p97
      %p100 = scmp.ne.s32.totalorder %s85, %s99
      %p101 = scmp.eq.s32.totalorder %s19, 0
      %p102 = por %p100, %p101
      %s103 = ssub.s32 %s20, %s32
      %p104 = scmp.eq.s32.totalorder %s103, 0
      %s106 = sadd.s32 %s105, 1
      %s107 = scalar_select %p104, %s105, %s106
      %p110 = pneg %p104
      %p111 = scmp.eq.s32.totalorder %s13, 1
      %p112 = por %p110, %p111
      %p113 = scmp.ne.s32.totalorder %s105, %s108
      %p114 = scmp.eq.s32.totalorder %s13, 0
      %p115 = por %p113, %p114
      %p116 = scmp.ne.s32.totalorder %s105, %s108
      %p117 = scmp.eq.s32.totalorder %s18, 1
      %p118 = por %p116, %p117
      %p119 = scmp.ne.s32.totalorder %s108, %s109
      %p120 = scmp.eq.s32.totalorder %s18, 0
      %p121 = por %p119, %p120
      %p122 = scmp.ne.s32.totalorder %s108, %s109
      %p123 = scmp.eq.s32.totalorder %s19, 1
      %p124 = por %p122, %p123
      %p126 = scmp.ne.s32.totalorder %s109, %s125
      %p127 = scmp.eq.s32.totalorder %s19, 0
      %p128 = por %p126, %p127
      %p129 = scmp.le.s32.totalorder 1, %s13
      %p130 = scmp.lt.s32.totalorder %s13, 3
      %p131 = pnand %p129, %p130
      %p132 = pneg %p131
      // Predicated region
      $region9: #{tpu_custom_call.1} parent=5 // pred_check
        _
      $region10: #{tpu_custom_call.1} parent=5 // pred_check_branch
        %134 = sbr.rel (%p131) target = $region12
      $region11: #{tpu_custom_call.1} parent=5 // pred_region
        %s135 = ssub.s32 %s13, 1
        // Predicated region
        $region13: #{tpu_custom_call.1} parent=11 // pred_check
          %p136 = pneg %p74
        $region14: #{tpu_custom_call.1} parent=11 // pred_check_branch
          %138 = sbr.rel (%p136) target = $region16
        $region15: #{tpu_custom_call.1} parent=11 // pred_region
          _
        $region16: #{tpu_custom_call.1} parent=11 // pred_fallthru
          _
        // Predicated region
        $region17: #{tpu_custom_call.1} parent=11 // pred_check
          %p139 = pneg %p95
        $region18: #{tpu_custom_call.1} parent=11 // pred_check_branch
          %141 = sbr.rel (%p139) target = $region20
        $region19: #{tpu_custom_call.1} parent=11 // pred_region
          %s143 = ssub.s32 2048, 2048
          %144 = vsyncadd [#allocation4], %s143
          %s145 = sshll.u32 [#allocation3], 4
          %s146 = int_to_ptr.vmem [resolvable:$true] %s145
          %151 = dma.hbm_to_vmem [thread:$0]  %s2, 2048, %s146, [#allocation4], 128, 128, 8
        $region20: #{tpu_custom_call.1} parent=11 // pred_fallthru
          _
      $region12: #{tpu_custom_call.1} parent=5 // pred_fallthru
        _
      %p152 = scmp.lt.s32.totalorder %s13, 2
      // Predicated region
      $region21: #{tpu_custom_call.1} parent=5 // pred_check
        %p153 = pneg %p152
      $region22: #{tpu_custom_call.1} parent=5 // pred_check_branch
        %155 = sbr.rel (%p153) target = $region24
      $region23: #{tpu_custom_call.1} parent=5 // pred_region
        // Predicated region
        $region25: #{tpu_custom_call.1} parent=23 // pred_check
          %p156 = pneg %p47
        $region26: #{tpu_custom_call.1} parent=23 // pred_check_branch
          %158 = sbr.rel (%p156) target = $region28
        $region27: #{tpu_custom_call.1} parent=23 // pred_region
          %s159 = smul.u32 2, %s21
          %p160 = scmp.lt.s32.totalorder %s20, 1
          %s161 = scalar_select %p160, %s20, 1
          %p162 = scmp.lt.s32.totalorder %s159, 1
          %s163 = scalar_select %p162, %s159, 1
          %s164 = smul.addr %s161, 2
          %s165 = sadd.s32 %s163, %s164
          %s166 = smul.addr %s165, 2
          %s167 = scalar_lea.vmem %s0, %s166
          %s168 = smul.u32 2, %s21
        $region28: #{tpu_custom_call.1} parent=23 // pred_fallthru
          _
      $region24: #{tpu_custom_call.1} parent=5 // pred_fallthru
        _
      %p169 = scmp.le.s32.totalorder 1, %s13
      %p170 = scmp.lt.s32.totalorder %s13, 3
      %p171 = pnand %p169, %p170
      %p172 = pneg %p171
      // Predicated region
      $region29: #{tpu_custom_call.1} parent=5 // pred_check
        _
      $region30: #{tpu_custom_call.1} parent=5 // pred_check_branch
        %174 = sbr.rel (%p171) target = $region32
      $region31: #{tpu_custom_call.1} parent=5 // pred_region
        %s175 = ssub.s32 %s13, 1
        // Predicated region
        $region33: #{tpu_custom_call.1} parent=31 // pred_check
          %p176 = pneg %p95
        $region34: #{tpu_custom_call.1} parent=31 // pred_check_branch
          %178 = sbr.rel (%p176) target = $region36
        $region35: #{tpu_custom_call.1} parent=31 // pred_region
          %179 = dma.done [#allocation4], 2048
        $region36: #{tpu_custom_call.1} parent=31 // pred_fallthru
          _
        %s180 = smul.u32 2, %s23
        %p181 = scmp.lt.s32.totalorder %s22, 1
        %s182 = scalar_select %p181, %s22, 1
        %p183 = scmp.lt.s32.totalorder %s180, 1
        %s184 = scalar_select %p183, %s180, 1
        %s185 = smul.addr %s182, 2
        %s186 = sadd.s32 %s184, %s185
        %s187 = smul.addr %s186, 2
        %s188 = scalar_lea.vmem %s0, %s187
        %p189 = pneg %p53
        %p190 = pneg %p50
        %p191 = pneg %p74
        %p192 = pneg %p71
        %p193 = pneg %p95
        %p194 = pneg %p92
        %p195 = pneg %p121
        %p196 = pneg %p118
        %s197 = sand.u32 %s108, 1
        %s198 = scalar_lea.sflag [#allocation5], %s197
        %s199 = sand.u32 %s108, 1
        %s200 = scalar_lea.vmem [#allocation6], %s199
        %s201 = smul.u32 2, %s23
        %p202 = scmp.lt.s32.totalorder %s22, 1
        %s203 = scalar_select %p202, %s22, 1
        %p204 = scmp.lt.s32.totalorder %s201, 1
        %s205 = scalar_select %p204, %s201, 1
        %s206 = smul.addr %s203, 2
        %s207 = sadd.s32 %s205, %s206
        %s208 = smul.addr %s207, 2
        %s209 = scalar_lea.vmem %s0, %s208
        %s210 = smul.u32 2, %s23
        %p212 = scmp.eq.s32.totalorder %s23, 0
        // Predicated region
        $region37: #{tpu_custom_call.1} parent=31 // pred_check
          %p213 = pneg %p212
        $region38: #{tpu_custom_call.1} parent=31 // pred_check_branch
          %215 = sbr.rel (%p213) target = $region40
        $region39: #{tpu_custom_call.1} parent=31 // pred_region
          %vm216 = vcmask 7168
          %217 = vst.msk [vmem:[#allocation2] sm:$0xff] %vm216, 0.0
          %218 = vst.msk [vmem:[#allocation2 + $0x8] sm:$0xff] %vm216, 0.0
          %219 = vst.msk [vmem:[#allocation2 + $0x10] sm:$0xff] %vm216, 0.0
          %220 = vst.msk [vmem:[#allocation2 + $0x18] sm:$0xff] %vm216, 0.0
          %221 = vst.msk [vmem:[#allocation2 + $0x20] sm:$0xff] %vm216, 0.0
          %222 = vst.msk [vmem:[#allocation2 + $0x28] sm:$0xff] %vm216, 0.0
          %223 = vst.msk [vmem:[#allocation2 + $0x30] sm:$0xff] %vm216, 0.0
          %224 = vst.msk [vmem:[#allocation2 + $0x38] sm:$0xff] %vm216, 0.0
          %225 = vst.msk [vmem:[#allocation2 + $0x40] sm:$0xff] %vm216, 0.0
          %226 = vst.msk [vmem:[#allocation2 + $0x48] sm:$0xff] %vm216, 0.0
          %227 = vst.msk [vmem:[#allocation2 + $0x50] sm:$0xff] %vm216, 0.0
          %228 = vst.msk [vmem:[#allocation2 + $0x58] sm:$0xff] %vm216, 0.0
          %229 = vst.msk [vmem:[#allocation2 + $0x60] sm:$0xff] %vm216, 0.0
          %230 = vst.msk [vmem:[#allocation2 + $0x68] sm:$0xff] %vm216, 0.0
          %231 = vst.msk [vmem:[#allocation2 + $0x70] sm:$0xff] %vm216, 0.0
          %232 = vst.msk [vmem:[#allocation2 + $0x78] sm:$0xff] %vm216, 0.0
        $region40: #{tpu_custom_call.1} parent=31 // pred_fallthru
          _
        %v233 = vld [vmem:[%s1] sm:$0xf]
        %v234 = vld [vmem:[%s1 + $0x4] sm:$0xf]
        %v235 = vld [vmem:[%s1 + $0x8] sm:$0xf]
        %v236 = vld [vmem:[%s1 + $0xc] sm:$0xf]
        %v237 = vld [vmem:[%s1 + $0x10] sm:$0xf]
        %v238 = vld [vmem:[%s1 + $0x14] sm:$0xf]
        %v239 = vld [vmem:[%s1 + $0x18] sm:$0xf]
        %v240 = vld [vmem:[%s1 + $0x1c] sm:$0xf]
        %v241 = vld [vmem:[%s1 + $0x20] sm:$0xf]
        %v242 = vld [vmem:[%s1 + $0x24] sm:$0xf]
        %v243 = vld [vmem:[%s1 + $0x28] sm:$0xf]
        %v244 = vld [vmem:[%s1 + $0x2c] sm:$0xf]
        %v245 = vld [vmem:[%s1 + $0x30] sm:$0xf]
        %v246 = vld [vmem:[%s1 + $0x34] sm:$0xf]
        %v247 = vld [vmem:[%s1 + $0x38] sm:$0xf]
        %v248 = vld [vmem:[%s1 + $0x3c] sm:$0xf]
        %v249 = vld [vmem:[%s209] sm:$0xf]
        %v266 = vunpack.c.l.b16 %v233
        %v267 = vunpack.c.l.b16 %v234
        %v268 = vunpack.c.l.b16 %v235
        %v269 = vunpack.c.l.b16 %v236
        %v270 = vunpack.c.l.b16 %v237
        %v271 = vunpack.c.l.b16 %v238
        %v272 = vunpack.c.l.b16 %v239
        %v273 = vunpack.c.l.b16 %v240
        %v274 = vunpack.c.l.b16 %v241
        %v275 = vunpack.c.l.b16 %v242
        %v276 = vunpack.c.l.b16 %v243
        %v277 = vunpack.c.l.b16 %v244
        %v278 = vunpack.c.l.b16 %v245
        %v279 = vunpack.c.l.b16 %v246
        %v280 = vunpack.c.l.b16 %v247
        %v281 = vunpack.c.l.b16 %v248
        %v282 = vpack.c.b16 %v267, %v266
        %v283 = vpack.c.b16 %v269, %v268
        %v284 = vpack.c.b16 %v271, %v270
        %v285 = vpack.c.b16 %v273, %v272
        %v286 = vpack.c.b16 %v275, %v274
        %v287 = vpack.c.b16 %v277, %v276
        %v288 = vpack.c.b16 %v279, %v278
        %v289 = vpack.c.b16 %v281, %v280
        %v292 = vunpack.c.l.s4 1983009808
        %v293 = vunpack.c.0.s8 %v292
        %v294 = vlaneseq
        %v295 = vshrl.u32 %v294, 7
        %v296 = vsub.s32 %v293, %v295
        %v297 = vrot.slane %v249, %v296
        %v298 = vcombine.high %v297, %v297
        %vm299 = vcmask 31744
        %v301 = vsel %vm299, %v282, 0
        %v304 = vsel %vm299, %v283, 0
        %v307 = vsel %vm299, %v284, 0
        %v310 = vsel %vm299, %v285, 0
        %v313 = vsel %vm299, %v286, 0
        %v316 = vsel %vm299, %v287, 0
        %v319 = vsel %vm299, %v288, 0
        %v322 = vsel %vm299, %v289, 0
        %vm324 = vcmask 1041408
        %v326 = vsel %vm324, %v297, 0
        %v329 = vsel %vm324, %v298, 0
        %331 = vmatprep.subr.bf16.mxu0 %v329
        %332 = vmatpush1.bf16.msra.mxu0 %v326
        %333 = vmatprep.subr.bf16.mxu0 0
        %334 = vmatpush1.bf16.msra.mxu0 0
        %335 = vmatprep.subr.bf16.mxu0 0
        %336 = vmatpush1.bf16.msra.mxu0 0
        %337 = vmatprep.subr.bf16.mxu0 0
        %338 = vmatpush1.bf16.msra.mxu0 0
        %339 = vmatprep.subr.bf16.mxu0 0
        %340 = vmatpush1.bf16.msra.mxu0 0
        %341 = vmatprep.subr.bf16.mxu0 0
        %342 = vmatpush1.bf16.msra.mxu0 0
        %343 = vmatprep.subr.bf16.mxu0 0
        %344 = vmatpush1.bf16.msra.mxu0 0
        %345 = vmatprep.subr.bf16.mxu0 0
        %346 = vmatpush1.bf16.msra.mxu0 0
        %347 = vmatprep.subr.bf16.mxu0 0
        %348 = vmatpush1.bf16.msra.mxu0 0
        %349 = vmatprep.subr.bf16.mxu0 0
        %350 = vmatpush1.bf16.msra.mxu0 0
        %351 = vmatprep.subr.bf16.mxu0 0
        %352 = vmatpush1.bf16.msra.mxu0 0
        %353 = vmatprep.subr.bf16.mxu0 0
        %354 = vmatpush1.bf16.msra.mxu0 0
        %355 = vmatprep.subr.bf16.mxu0 0
        %356 = vmatpush1.bf16.msra.mxu0 0
        %357 = vmatprep.subr.bf16.mxu0 0
        %358 = vmatpush1.bf16.msra.mxu0 0
        %359 = vmatprep.subr.bf16.mxu0 0
        %360 = vmatpush1.bf16.msra.mxu0 0
        %361 = vmatprep.subr.bf16.mxu0 0
        %362 = vmatpush1.bf16.msra.mxu0 0
        %363 = vmatprep.mubr.bf16.mxu0 0
        %364 = vmatmul.mubr.bf16.gmra.mrb[0].mxu0 %v301
        %v365 = vpop.f32.mrb[0].mxu0
        %v366 = vadd.f32 0.0, %v365
        %v367 = vpop.f32.mrb[0].mxu0
        %v368 = vadd.f32 0.0, %v367
        %v369 = vpop.f32.mrb[0].mxu0
        %v370 = vadd.f32 0.0, %v369
        %v371 = vpop.f32.mrb[0].mxu0
        %v372 = vadd.f32 0.0, %v371
        %373 = vmatprep.mubr.bf16.mxu0 0
        %374 = vmatmul.mubr.bf16.gmra.mrb[0].mxu0 %v304
        %v375 = vpop.f32.mrb[0].mxu0
        %v376 = vadd.f32 0.0, %v375
        %v377 = vpop.f32.mrb[0].mxu0
        %v378 = vadd.f32 0.0, %v377
        %v379 = vpop.f32.mrb[0].mxu0
        %v380 = vadd.f32 0.0, %v379
        %v381 = vpop.f32.mrb[0].mxu0
        %v382 = vadd.f32 0.0, %v381
        %383 = vmatprep.mubr.bf16.mxu0 0
        %384 = vmatmul.mubr.bf16.gmra.mrb[0].mxu0 %v307
        %v385 = vpop.f32.mrb[0].mxu0
        %v386 = vadd.f32 0.0, %v385
        %v387 = vpop.f32.mrb[0].mxu0
        %v388 = vadd.f32 0.0, %v387
        %v389 = vpop.f32.mrb[0].mxu0
        %v390 = vadd.f32 0.0, %v389
        %v391 = vpop.f32.mrb[0].mxu0
        %v392 = vadd.f32 0.0, %v391
        %393 = vmatprep.mubr.bf16.mxu0 0
        %394 = vmatmul.mubr.bf16.gmra.mrb[0].mxu0 %v310
        %v395 = vpop.f32.mrb[0].mxu0
        %v396 = vadd.f32 0.0, %v395
        %v397 = vpop.f32.mrb[0].mxu0
        %v398 = vadd.f32 0.0, %v397
        %v399 = vpop.f32.mrb[0].mxu0
        %v400 = vadd.f32 0.0, %v399
        %v401 = vpop.f32.mrb[0].mxu0
        %v402 = vadd.f32 0.0, %v401
        %403 = vmatprep.mubr.bf16.mxu0 0
        %404 = vmatmul.mubr.bf16.gmra.mrb[0].mxu0 %v313
        %v405 = vpop.f32.mrb[0].mxu0
        %v406 = vadd.f32 0.0, %v405
        %v407 = vpop.f32.mrb[0].mxu0
        %v408 = vadd.f32 0.0, %v407
        %v409 = vpop.f32.mrb[0].mxu0
        %v410 = vadd.f32 0.0, %v409
        %v411 = vpop.f32.mrb[0].mxu0
        %v412 = vadd.f32 0.0, %v411
        %413 = vmatprep.mubr.bf16.mxu0 0
        %414 = vmatmul.mubr.bf16.gmra.mrb[0].mxu0 %v316
        %v415 = vpop.f32.mrb[0].mxu0
        %v416 = vadd.f32 0.0, %v415
        %v417 = vpop.f32.mrb[0].mxu0
        %v418 = vadd.f32 0.0, %v417
        %v419 = vpop.f32.mrb[0].mxu0
        %v420 = vadd.f32 0.0, %v419
        %v421 = vpop.f32.mrb[0].mxu0
        %v422 = vadd.f32 0.0, %v421
        %423 = vmatprep.mubr.bf16.mxu0 0
        %424 = vmatmul.mubr.bf16.gmra.mrb[0].mxu0 %v319
        %v425 = vpop.f32.mrb[0].mxu0
        %v426 = vadd.f32 0.0, %v425
        %v427 = vpop.f32.mrb[0].mxu0
        %v428 = vadd.f32 0.0, %v427
        %v429 = vpop.f32.mrb[0].mxu0
        %v430 = vadd.f32 0.0, %v429
        %v431 = vpop.f32.mrb[0].mxu0
        %v432 = vadd.f32 0.0, %v431
        %433 = vmatprep.mubr.bf16.mxu0 0
        %434 = vmatmul.mubr.bf16.gmra.mrb[0].mxu0 %v322
        %v435 = vpop.f32.mrb[0].mxu0
        %v436 = vadd.f32 0.0, %v435
        %v437 = vpop.f32.mrb[0].mxu0
        %v438 = vadd.f32 0.0, %v437
        %v439 = vpop.f32.mrb[0].mxu0
        %v440 = vadd.f32 0.0, %v439
        %v441 = vpop.f32.mrb[0].mxu0
        %v442 = vadd.f32 0.0, %v441
        %443 = vdwg.mxu0
        %v444 = vmax.f32 %v366, 0.0
        %v445 = vmax.f32 %v368, 0.0
        %v446 = vmax.f32 %v370, 0.0
        %v447 = vmax.f32 %v372, 0.0
        %v448 = vmax.f32 %v376, 0.0
        %v449 = vmax.f32 %v378, 0.0
        %v450 = vmax.f32 %v380, 0.0
        %v451 = vmax.f32 %v382, 0.0
        %v452 = vmax.f32 %v386, 0.0
        %v453 = vmax.f32 %v388, 0.0
        %v454 = vmax.f32 %v390, 0.0
        %v455 = vmax.f32 %v392, 0.0
        %v456 = vmax.f32 %v396, 0.0
        %v457 = vmax.f32 %v398, 0.0
        %v458 = vmax.f32 %v400, 0.0
        %v459 = vmax.f32 %v402, 0.0
        %v460 = vmax.f32 %v406, 0.0
        %v461 = vmax.f32 %v408, 0.0
        %v462 = vmax.f32 %v410, 0.0
        %v463 = vmax.f32 %v412, 0.0
        %v464 = vmax.f32 %v416, 0.0
        %v465 = vmax.f32 %v418, 0.0
        %v466 = vmax.f32 %v420, 0.0
        %v467 = vmax.f32 %v422, 0.0
        %v468 = vmax.f32 %v426, 0.0
        %v469 = vmax.f32 %v428, 0.0
        %v470 = vmax.f32 %v430, 0.0
        %v471 = vmax.f32 %v432, 0.0
        %v472 = vmax.f32 %v436, 0.0
        %v473 = vmax.f32 %v438, 0.0
        %v474 = vmax.f32 %v440, 0.0
        %v475 = vmax.f32 %v442, 0.0
        %v476 = vld [vmem:[#allocation2] sm:$0xff]
        %v477 = vld [vmem:[#allocation2 + $0x8] sm:$0xff]
        %v478 = vld [vmem:[#allocation2 + $0x10] sm:$0xff]
        %v479 = vld [vmem:[#allocation2 + $0x18] sm:$0xff]
        %v480 = vld [vmem:[#allocation2 + $0x20] sm:$0xff]
        %v481 = vld [vmem:[#allocation2 + $0x28] sm:$0xff]
        %v482 = vld [vmem:[#allocation2 + $0x30] sm:$0xff]
        %v483 = vld [vmem:[#allocation2 + $0x38] sm:$0xff]
        %v484 = vld [vmem:[#allocation2 + $0x40] sm:$0xff]
        %v485 = vld [vmem:[#allocation2 + $0x48] sm:$0xff]
        %v486 = vld [vmem:[#allocation2 + $0x50] sm:$0xff]
        %v487 = vld [vmem:[#allocation2 + $0x58] sm:$0xff]
        %v488 = vld [vmem:[#allocation2 + $0x60] sm:$0xff]
        %v489 = vld [vmem:[#allocation2 + $0x68] sm:$0xff]
        %v490 = vld [vmem:[#allocation2 + $0x70] sm:$0xff]
        %v491 = vld [vmem:[#allocation2 + $0x78] sm:$0xff]
        %v492 = vadd.f32 %v444, %v445
        %493 = vadd.xlane.f32.xlu0 %v492
        %v494 = vpop.xlane.xlu0 %493
        %v495 = vadd.f32 %v446, %v447
        %496 = vadd.xlane.f32.xlu0 %v495
        %v497 = vpop.xlane.xlu0 %496
        %v498 = vadd.f32 %v448, %v449
        %499 = vadd.xlane.f32.xlu0 %v498
        %v500 = vpop.xlane.xlu0 %499
        %v501 = vadd.f32 %v450, %v451
        %502 = vadd.xlane.f32.xlu0 %v501
        %v503 = vpop.xlane.xlu0 %502
        %v504 = vadd.f32 %v452, %v453
        %505 = vadd.xlane.f32.xlu0 %v504
        %v506 = vpop.xlane.xlu0 %505
        %v507 = vadd.f32 %v454, %v455
        %508 = vadd.xlane.f32.xlu0 %v507
        %v509 = vpop.xlane.xlu0 %508
        %v510 = vadd.f32 %v456, %v457
        %511 = vadd.xlane.f32.xlu0 %v510
        %v512 = vpop.xlane.xlu0 %511
        %v513 = vadd.f32 %v458, %v459
        %514 = vadd.xlane.f32.xlu0 %v513
        %v515 = vpop.xlane.xlu0 %514
        %v516 = vadd.f32 %v460, %v461
        %517 = vadd.xlane.f32.xlu0 %v516
        %v518 = vpop.xlane.xlu0 %517
        %v519 = vadd.f32 %v462, %v463
        %520 = vadd.xlane.f32.xlu0 %v519
        %v521 = vpop.xlane.xlu0 %520
        %v522 = vadd.f32 %v464, %v465
        %523 = vadd.xlane.f32.xlu0 %v522
        %v524 = vpop.xlane.xlu0 %523
        %v525 = vadd.f32 %v466, %v467
        %526 = vadd.xlane.f32.xlu0 %v525
        %v527 = vpop.xlane.xlu0 %526
        %v528 = vadd.f32 %v468, %v469
        %529 = vadd.xlane.f32.xlu0 %v528
        %v530 = vpop.xlane.xlu0 %529
        %v531 = vadd.f32 %v470, %v471
        %532 = vadd.xlane.f32.xlu0 %v531
        %v533 = vpop.xlane.xlu0 %532
        %v534 = vadd.f32 %v472, %v473
        %535 = vadd.xlane.f32.xlu0 %v534
        %v536 = vpop.xlane.xlu0 %535
        %v537 = vadd.f32 %v474, %v475
        %538 = vadd.xlane.f32.xlu0 %v537
        %v539 = vpop.xlane.xlu0 %538
        %v540 = vadd.f32 %v476, %v494
        %v541 = vadd.f32 %v477, %v497
        %v542 = vadd.f32 %v478, %v500
        %v543 = vadd.f32 %v479, %v503
        %v544 = vadd.f32 %v480, %v506
        %v545 = vadd.f32 %v481, %v509
        %v546 = vadd.f32 %v482, %v512
        %v547 = vadd.f32 %v483, %v515
        %v548 = vadd.f32 %v484, %v518
        %v549 = vadd.f32 %v485, %v521
        %v550 = vadd.f32 %v486, %v524
        %v551 = vadd.f32 %v487, %v527
        %v552 = vadd.f32 %v488, %v530
        %v553 = vadd.f32 %v489, %v533
        %v554 = vadd.f32 %v490, %v536
        %v555 = vadd.f32 %v491, %v539
        %vm556 = vcmask 7168
        %557 = vst.msk [vmem:[#allocation2] sm:$0xff] %vm556, %v540
        %558 = vst.msk [vmem:[#allocation2 + $0x8] sm:$0xff] %vm556, %v541
        %559 = vst.msk [vmem:[#allocation2 + $0x10] sm:$0xff] %vm556, %v542
        %560 = vst.msk [vmem:[#allocation2 + $0x18] sm:$0xff] %vm556, %v543
        %561 = vst.msk [vmem:[#allocation2 + $0x20] sm:$0xff] %vm556, %v544
        %562 = vst.msk [vmem:[#allocation2 + $0x28] sm:$0xff] %vm556, %v545
        %563 = vst.msk [vmem:[#allocation2 + $0x30] sm:$0xff] %vm556, %v546
        %564 = vst.msk [vmem:[#allocation2 + $0x38] sm:$0xff] %vm556, %v547
        %565 = vst.msk [vmem:[#allocation2 + $0x40] sm:$0xff] %vm556, %v548
        %566 = vst.msk [vmem:[#allocation2 + $0x48] sm:$0xff] %vm556, %v549
        %567 = vst.msk [vmem:[#allocation2 + $0x50] sm:$0xff] %vm556, %v550
        %568 = vst.msk [vmem:[#allocation2 + $0x58] sm:$0xff] %vm556, %v551
        %569 = vst.msk [vmem:[#allocation2 + $0x60] sm:$0xff] %vm556, %v552
        %570 = vst.msk [vmem:[#allocation2 + $0x68] sm:$0xff] %vm556, %v553
        %571 = vst.msk [vmem:[#allocation2 + $0x70] sm:$0xff] %vm556, %v554
        %572 = vst.msk [vmem:[#allocation2 + $0x78] sm:$0xff] %vm556, %v555
        // Predicated region
        $region41: #{tpu_custom_call.1} parent=31 // pred_check
          %p573 = pneg %p212
        $region42: #{tpu_custom_call.1} parent=31 // pred_check_branch
          %575 = sbr.rel (%p573) target = $region44
        $region43: #{tpu_custom_call.1} parent=31 // pred_region
          %v576 = vld [vmem:[#allocation2] sm:$0xff]
          %v577 = vld [vmem:[#allocation2 + $0x8] sm:$0xff]
          %v578 = vld [vmem:[#allocation2 + $0x10] sm:$0xff]
          %v579 = vld [vmem:[#allocation2 + $0x18] sm:$0xff]
          %v580 = vld [vmem:[#allocation2 + $0x20] sm:$0xff]
          %v581 = vld [vmem:[#allocation2 + $0x28] sm:$0xff]
          %v582 = vld [vmem:[#allocation2 + $0x30] sm:$0xff]
          %v583 = vld [vmem:[#allocation2 + $0x38] sm:$0xff]
          %v584 = vld [vmem:[#allocation2 + $0x40] sm:$0xff]
          %v585 = vld [vmem:[#allocation2 + $0x48] sm:$0xff]
          %v586 = vld [vmem:[#allocation2 + $0x50] sm:$0xff]
          %v587 = vld [vmem:[#allocation2 + $0x58] sm:$0xff]
          %v588 = vld [vmem:[#allocation2 + $0x60] sm:$0xff]
          %v589 = vld [vmem:[#allocation2 + $0x68] sm:$0xff]
          %v590 = vld [vmem:[#allocation2 + $0x70] sm:$0xff]
          %v591 = vld [vmem:[#allocation2 + $0x78] sm:$0xff]
          %v592 = vmul.f32 %v576, 0.00390625
          %v593 = vmul.f32 %v577, 0.00390625
          %v594 = vmul.f32 %v578, 0.00390625
          %v595 = vmul.f32 %v579, 0.00390625
          %v596 = vmul.f32 %v580, 0.00390625
          %v597 = vmul.f32 %v581, 0.00390625
          %v598 = vmul.f32 %v582, 0.00390625
          %v599 = vmul.f32 %v583, 0.00390625
          %v600 = vmul.f32 %v584, 0.00390625
          %v601 = vmul.f32 %v585, 0.00390625
          %v602 = vmul.f32 %v586, 0.00390625
          %v603 = vmul.f32 %v587, 0.00390625
          %v604 = vmul.f32 %v588, 0.00390625
          %v605 = vmul.f32 %v589, 0.00390625
          %v606 = vmul.f32 %v590, 0.00390625
          %v607 = vmul.f32 %v591, 0.00390625
          %v608 = vmul.f32 %v592, %v592
          %v609 = vmul.f32 %v593, %v593
          %v610 = vmul.f32 %v594, %v594
          %v611 = vmul.f32 %v595, %v595
          %v612 = vmul.f32 %v596, %v596
          %v613 = vmul.f32 %v597, %v597
          %v614 = vmul.f32 %v598, %v598
          %v615 = vmul.f32 %v599, %v599
          %v616 = vmul.f32 %v600, %v600
          %v617 = vmul.f32 %v601, %v601
          %v618 = vmul.f32 %v602, %v602
          %v619 = vmul.f32 %v603, %v603
          %v620 = vmul.f32 %v604, %v604
          %v621 = vmul.f32 %v605, %v605
          %v622 = vmul.f32 %v606, %v606
          %v623 = vmul.f32 %v607, %v607
          %v624 = vsel %vm556, %v608, 0.0
          %v625 = vsel %vm556, %v609, 0.0
          %v626 = vadd.f32 %v624, %v625
          %v627 = vsel %vm556, %v610, 0.0
          %v628 = vadd.f32 %v626, %v627
          %v629 = vsel %vm556, %v611, 0.0
          %v630 = vadd.f32 %v628, %v629
          %v631 = vsel %vm556, %v612, 0.0
          %v632 = vadd.f32 %v630, %v631
          %v633 = vsel %vm556, %v613, 0.0
          %v634 = vadd.f32 %v632, %v633
          %v635 = vsel %vm556, %v614, 0.0
          %v636 = vadd.f32 %v634, %v635
          %v637 = vsel %vm556, %v615, 0.0
          %v638 = vadd.f32 %v636, %v637
          %v639 = vsel %vm556, %v616, 0.0
          %v640 = vadd.f32 %v638, %v639
          %v641 = vsel %vm556, %v617, 0.0
          %v642 = vadd.f32 %v640, %v641
          %v643 = vsel %vm556, %v618, 0.0
          %v644 = vadd.f32 %v642, %v643
          %v645 = vsel %vm556, %v619, 0.0
          %v646 = vadd.f32 %v644, %v645
          %v647 = vsel %vm556, %v620, 0.0
          %v648 = vadd.f32 %v646, %v647
          %v649 = vsel %vm556, %v621, 0.0
          %v650 = vadd.f32 %v648, %v649
          %v651 = vsel %vm556, %v622, 0.0
          %v652 = vadd.f32 %v650, %v651
          %v653 = vsel %vm556, %v623, 0.0
          %v654 = vadd.f32 %v652, %v653
          %v655 = vrot.slane %v654, 4
          %v656 = vadd.f32 %v654, %v655
          %v657 = vrot.slane %v656, 2
          %v658 = vadd.f32 %v656, %v657
          %v659 = vrot.slane %v658, 1
          %v660 = vadd.f32 %v658, %v659
          %v661 = vrsqrt.pop %v660
          %v662 = vmul.f32 %v592, %v661
          %v663 = vmul.f32 %v593, %v661
          %v664 = vmul.f32 %v594, %v661
          %v665 = vmul.f32 %v595, %v661
          %v666 = vmul.f32 %v596, %v661
          %v667 = vmul.f32 %v597, %v661
          %v668 = vmul.f32 %v598, %v661
          %v669 = vmul.f32 %v599, %v661
          %v670 = vmul.f32 %v600, %v661
          %v671 = vmul.f32 %v601, %v661
          %v672 = vmul.f32 %v602, %v661
          %v673 = vmul.f32 %v603, %v661
          %v674 = vmul.f32 %v604, %v661
          %v675 = vmul.f32 %v605, %v661
          %v676 = vmul.f32 %v606, %v661
          %v677 = vmul.f32 %v607, %v661
          %v678 = vlaneseq
          %v679 = vshrl.u32 %v678, 7
          %v680 = vadd.s32 %v679, 8
          %v681 = vadd.s32 %v679, 16
          %v682 = vadd.s32 %v679, 24
          %v683 = vadd.s32 %v679, 32
          %v684 = vadd.s32 %v679, 40
          %v685 = vadd.s32 %v679, 48
          %v686 = vadd.s32 %v679, 56
          %v687 = vadd.s32 %v679, 64
          %v688 = vadd.s32 %v679, 72
          %v689 = vadd.s32 %v679, 80
          %v690 = vadd.s32 %v679, 88
          %v691 = vadd.s32 %v679, 96
          %v692 = vadd.s32 %v679, 104
          %v693 = vadd.s32 %v679, 112
          %v694 = vadd.s32 %v679, 120
          %v695 = vlaneseq
          %v696 = vand.u32 %v695, 127
          %vm697 = vcmp.eq.s32.totalorder %v679, %v696
          %vm698 = vcmp.eq.s32.totalorder %v680, %v696
          %vm699 = vcmp.eq.s32.totalorder %v681, %v696
          %vm700 = vcmp.eq.s32.totalorder %v682, %v696
          %vm701 = vcmp.eq.s32.totalorder %v683, %v696
          %vm702 = vcmp.eq.s32.totalorder %v684, %v696
          %vm703 = vcmp.eq.s32.totalorder %v685, %v696
          %vm704 = vcmp.eq.s32.totalorder %v686, %v696
          %vm705 = vcmp.eq.s32.totalorder %v687, %v696
          %vm706 = vcmp.eq.s32.totalorder %v688, %v696
          %vm707 = vcmp.eq.s32.totalorder %v689, %v696
          %vm708 = vcmp.eq.s32.totalorder %v690, %v696
          %vm709 = vcmp.eq.s32.totalorder %v691, %v696
          %vm710 = vcmp.eq.s32.totalorder %v692, %v696
          %vm711 = vcmp.eq.s32.totalorder %v693, %v696
          %vm712 = vcmp.eq.s32.totalorder %v694, %v696
          %v713 = vsel %vm697, 1, 0
          %v714 = vsel %vm698, 1, 0
          %v715 = vsel %vm699, 1, 0
          %v716 = vsel %vm700, 1, 0
          %v717 = vsel %vm701, 1, 0
          %v718 = vsel %vm702, 1, 0
          %v719 = vsel %vm703, 1, 0
          %v720 = vsel %vm704, 1, 0
          %v721 = vsel %vm705, 1, 0
          %v722 = vsel %vm706, 1, 0
          %v723 = vsel %vm707, 1, 0
          %v724 = vsel %vm708, 1, 0
          %v725 = vsel %vm709, 1, 0
          %v726 = vsel %vm710, 1, 0
          %v727 = vsel %vm711, 1, 0
          %v728 = vsel %vm712, 1, 0
          %v729 = vcvt.s32.f32 %v713
          %v730 = vcvt.s32.f32 %v714
          %v731 = vcvt.s32.f32 %v715
          %v732 = vcvt.s32.f32 %v716
          %v733 = vcvt.s32.f32 %v717
          %v734 = vcvt.s32.f32 %v718
          %v735 = vcvt.s32.f32 %v719
          %v736 = vcvt.s32.f32 %v720
          %v737 = vcvt.s32.f32 %v721
          %v738 = vcvt.s32.f32 %v722
          %v739 = vcvt.s32.f32 %v723
          %v740 = vcvt.s32.f32 %v724
          %v741 = vcvt.s32.f32 %v725
          %v742 = vcvt.s32.f32 %v726
          %v743 = vcvt.s32.f32 %v727
          %v744 = vcvt.s32.f32 %v728
          %746 = vset.pattern.permute.xlu0 0
          %747 = vperm.xlu0 %746, %v662
          %v748 = vpop.permute.xlu0 %747
          %751 = vset.pattern.permute.xlu0 0
          %752 = vperm.xlu0 %751, %v663
          %v753 = vpop.permute.xlu0 %752
          %756 = vset.pattern.permute.xlu0 0
          %757 = vperm.xlu0 %756, %v664
          %v758 = vpop.permute.xlu0 %757
          %761 = vset.pattern.permute.xlu0 0
          %762 = vperm.xlu0 %761, %v665
          %v763 = vpop.permute.xlu0 %762
          %766 = vset.pattern.permute.xlu0 0
          %767 = vperm.xlu0 %766, %v666
          %v768 = vpop.permute.xlu0 %767
          %771 = vset.pattern.permute.xlu0 0
          %772 = vperm.xlu0 %771, %v667
          %v773 = vpop.permute.xlu0 %772
          %776 = vset.pattern.permute.xlu0 0
          %777 = vperm.xlu0 %776, %v668
          %v778 = vpop.permute.xlu0 %777
          %781 = vset.pattern.permute.xlu0 0
          %782 = vperm.xlu0 %781, %v669
          %v783 = vpop.permute.xlu0 %782
          %786 = vset.pattern.permute.xlu0 0
          %787 = vperm.xlu0 %786, %v670
          %v788 = vpop.permute.xlu0 %787
          %791 = vset.pattern.permute.xlu0 0
          %792 = vperm.xlu0 %791, %v671
          %v793 = vpop.permute.xlu0 %792
          %796 = vset.pattern.permute.xlu0 0
          %797 = vperm.xlu0 %796, %v672
          %v798 = vpop.permute.xlu0 %797
          %801 = vset.pattern.permute.xlu0 0
          %802 = vperm.xlu0 %801, %v673
          %v803 = vpop.permute.xlu0 %802
          %806 = vset.pattern.permute.xlu0 0
          %807 = vperm.xlu0 %806, %v674
          %v808 = vpop.permute.xlu0 %807
          %811 = vset.pattern.permute.xlu0 0
          %812 = vperm.xlu0 %811, %v675
          %v813 = vpop.permute.xlu0 %812
          %816 = vset.pattern.permute.xlu0 0
          %817 = vperm.xlu0 %816, %v676
          %v818 = vpop.permute.xlu0 %817
          %821 = vset.pattern.permute.xlu0 0
          %822 = vperm.xlu0 %821, %v677
          %v823 = vpop.permute.xlu0 %822
          %v825 = vmul.f32 %v748, %v729
          %v826 = vmul.f32 %v753, %v730
          %v827 = vmul.f32 %v758, %v731
          %v828 = vmul.f32 %v763, %v732
          %v829 = vmul.f32 %v768, %v733
          %v830 = vmul.f32 %v773, %v734
          %v831 = vmul.f32 %v778, %v735
          %v832 = vmul.f32 %v783, %v736
          %v833 = vmul.f32 %v788, %v737
          %v834 = vmul.f32 %v793, %v738
          %v835 = vmul.f32 %v798, %v739
          %v836 = vmul.f32 %v803, %v740
          %v837 = vmul.f32 %v808, %v741
          %v838 = vmul.f32 %v813, %v742
          %v839 = vmul.f32 %v818, %v743
          %v840 = vmul.f32 %v823, %v744
          %v841 = vadd.f32 %v825, %v826
          %v842 = vadd.f32 %v841, %v827
          %v843 = vadd.f32 %v842, %v828
          %v844 = vadd.f32 %v843, %v829
          %v845 = vadd.f32 %v844, %v830
          %v846 = vadd.f32 %v845, %v831
          %v847 = vadd.f32 %v846, %v832
          %v848 = vadd.f32 %v847, %v833
          %v849 = vadd.f32 %v848, %v834
          %v850 = vadd.f32 %v849, %v835
          %v851 = vadd.f32 %v850, %v836
          %v852 = vadd.f32 %v851, %v837
          %v853 = vadd.f32 %v852, %v838
          %v854 = vadd.f32 %v853, %v839
          %v855 = vadd.f32 %v854, %v840
          %v856 = vrot.slane %v855, 4
          %v857 = vadd.f32 %v855, %v856
          %v858 = vrot.slane %v857, 2
          %v859 = vadd.f32 %v857, %v858
          %v860 = vrot.slane %v859, 1
          %v861 = vadd.f32 %v859, %v860
          %v862 = vld [vmem:[#allocation3] sm:$0xff]
          %v863 = vld [vmem:[#allocation3 + $0x8] sm:$0xff]
          %v864 = vld [vmem:[#allocation3 + $0x10] sm:$0xff]
          %v865 = vld [vmem:[#allocation3 + $0x18] sm:$0xff]
          %v866 = vld [vmem:[#allocation3 + $0x20] sm:$0xff]
          %v867 = vld [vmem:[#allocation3 + $0x28] sm:$0xff]
          %v868 = vld [vmem:[#allocation3 + $0x30] sm:$0xff]
          %v869 = vld [vmem:[#allocation3 + $0x38] sm:$0xff]
          %v870 = vld [vmem:[#allocation3 + $0x40] sm:$0xff]
          %v871 = vld [vmem:[#allocation3 + $0x48] sm:$0xff]
          %v872 = vld [vmem:[#allocation3 + $0x50] sm:$0xff]
          %v873 = vld [vmem:[#allocation3 + $0x58] sm:$0xff]
          %v874 = vld [vmem:[#allocation3 + $0x60] sm:$0xff]
          %v875 = vld [vmem:[#allocation3 + $0x68] sm:$0xff]
          %v876 = vld [vmem:[#allocation3 + $0x70] sm:$0xff]
          %v877 = vld [vmem:[#allocation3 + $0x78] sm:$0xff]
          %878 = vmatprep.subr.mxu0 0.0
          %v879 = vand.u32 %v862, 4294901760
          %880 = vmatpush1.msra.mxu0 %v879
          %881 = vmatprep.subr.mxu0 0.0
          %v882 = vand.u32 %v863, 4294901760
          %883 = vmatpush1.msra.mxu0 %v882
          %884 = vmatprep.subr.mxu0 0.0
          %v885 = vand.u32 %v864, 4294901760
          %886 = vmatpush1.msra.mxu0 %v885
          %887 = vmatprep.subr.mxu0 0.0
          %v888 = vand.u32 %v865, 4294901760
          %889 = vmatpush1.msra.mxu0 %v888
          %890 = vmatprep.subr.mxu0 0.0
          %v891 = vand.u32 %v866, 4294901760
          %892 = vmatpush1.msra.mxu0 %v891
          %893 = vmatprep.subr.mxu0 0.0
          %v894 = vand.u32 %v867, 4294901760
          %895 = vmatpush1.msra.mxu0 %v894
          %896 = vmatprep.subr.mxu0 0.0
          %v897 = vand.u32 %v868, 4294901760
          %898 = vmatpush1.msra.mxu0 %v897
          %899 = vmatprep.subr.mxu0 0.0
          %v900 = vand.u32 %v869, 4294901760
          %901 = vmatpush1.msra.mxu0 %v900
          %902 = vmatprep.subr.mxu0 0.0
          %v903 = vand.u32 %v870, 4294901760
          %904 = vmatpush1.msra.mxu0 %v903
          %905 = vmatprep.subr.mxu0 0.0
          %v906 = vand.u32 %v871, 4294901760
          %907 = vmatpush1.msra.mxu0 %v906
          %908 = vmatprep.subr.mxu0 0.0
          %v909 = vand.u32 %v872, 4294901760
          %910 = vmatpush1.msra.mxu0 %v909
          %911 = vmatprep.subr.mxu0 0.0
          %v912 = vand.u32 %v873, 4294901760
          %913 = vmatpush1.msra.mxu0 %v912
          %914 = vmatprep.subr.mxu0 0.0
          %v915 = vand.u32 %v874, 4294901760
          %916 = vmatpush1.msra.mxu0 %v915
          %917 = vmatprep.subr.mxu0 0.0
          %v918 = vand.u32 %v875, 4294901760
          %919 = vmatpush1.msra.mxu0 %v918
          %920 = vmatprep.subr.mxu0 0.0
          %v921 = vand.u32 %v876, 4294901760
          %922 = vmatpush1.msra.mxu0 %v921
          %923 = vmatprep.subr.mxu0 0.0
          %v924 = vand.u32 %v877, 4294901760
          %925 = vmatpush1.msra.mxu0 %v924
          %926 = vmatprep.subr.mxu0 0.0
          %927 = vmatpush1.msra.mxu0 0.0
          %928 = vmatprep.subr.mxu0 0.0
          %929 = vmatpush1.msra.mxu0 0.0
          %930 = vmatprep.subr.mxu0 0.0
          %931 = vmatpush1.msra.mxu0 0.0
          %932 = vmatprep.subr.mxu0 0.0
          %933 = vmatpush1.msra.mxu0 0.0
          %934 = vmatprep.subr.mxu0 0.0
          %935 = vmatpush1.msra.mxu0 0.0
          %936 = vmatprep.subr.mxu0 0.0
          %937 = vmatpush1.msra.mxu0 0.0
          %938 = vmatprep.subr.mxu0 0.0
          %939 = vmatpush1.msra.mxu0 0.0
          %940 = vmatprep.subr.mxu0 0.0
          %941 = vmatpush1.msra.mxu0 0.0
          %942 = vmatprep.subr.mxu0 0.0
          %943 = vmatpush1.msra.mxu0 0.0
          %944 = vmatprep.subr.mxu0 0.0
          %945 = vmatpush1.msra.mxu0 0.0
          %946 = vmatprep.subr.mxu0 0.0
          %947 = vmatpush1.msra.mxu0 0.0
          %948 = vmatprep.subr.mxu0 0.0
          %949 = vmatpush1.msra.mxu0 0.0
          %950 = vmatprep.subr.mxu0 0.0
          %951 = vmatpush1.msra.mxu0 0.0
          %952 = vmatprep.subr.mxu0 0.0
          %953 = vmatpush1.msra.mxu0 0.0
          %954 = vmatprep.subr.mxu0 0.0
          %955 = vmatpush1.msra.mxu0 0.0
          %956 = vmatprep.subr.mxu0 0.0
          %957 = vmatpush1.msra.mxu0 0.0
          %958 = vmatprep.mubr.f32.mxu0 0.0
          %v959 = vand.u32 %v861, 4294901760
          %v960 = vsub.f32 %v861, %v959
          %v961 = vand.u32 %v960, 4294901760
          %v962 = vsub.f32 %v960, %v961
          %v963 = vand.u32 %v962, 4294901760
          %964 = vmatmul.mubr.f32.gmra.mrb[0].mxu0 %v963
          %v965 = vpop.f32.mrb[0].mxu0
          %v966 = vadd.f32 0.0, %v965
          %v967 = vpop.f32.mrb[0].mxu0
          %968 = vdwg.mxu0
          %969 = vmatprep.subr.mxu0 0.0
          %v970 = vand.u32 %v862, 4294901760
          %v971 = vsub.f32 %v862, %v970
          %v972 = vand.u32 %v971, 4294901760
          %v973 = vsub.f32 %v971, %v972
          %v974 = vand.u32 %v973, 4294901760
          %975 = vmatpush1.msra.mxu0 %v974
          %976 = vmatprep.subr.mxu0 0.0
          %v977 = vand.u32 %v863, 4294901760
          %v978 = vsub.f32 %v863, %v977
          %v979 = vand.u32 %v978, 4294901760
          %v980 = vsub.f32 %v978, %v979
          %v981 = vand.u32 %v980, 4294901760
          %982 = vmatpush1.msra.mxu0 %v981
          %983 = vmatprep.subr.mxu0 0.0
          %v984 = vand.u32 %v864, 4294901760
          %v985 = vsub.f32 %v864, %v984
          %v986 = vand.u32 %v985, 4294901760
          %v987 = vsub.f32 %v985, %v986
          %v988 = vand.u32 %v987, 4294901760
          %989 = vmatpush1.msra.mxu0 %v988
          %990 = vmatprep.subr.mxu0 0.0
          %v991 = vand.u32 %v865, 4294901760
          %v992 = vsub.f32 %v865, %v991
          %v993 = vand.u32 %v992, 4294901760
          %v994 = vsub.f32 %v992, %v993
          %v995 = vand.u32 %v994, 4294901760
          %996 = vmatpush1.msra.mxu0 %v995
          %997 = vmatprep.subr.mxu0 0.0
          %v998 = vand.u32 %v866, 4294901760
          %v999 = vsub.f32 %v866, %v998
          %v1000 = vand.u32 %v999, 4294901760
          %v1001 = vsub.f32 %v999, %v1000
          %v1002 = vand.u32 %v1001, 4294901760
          %1003 = vmatpush1.msra.mxu0 %v1002
          %1004 = vmatprep.subr.mxu0 0.0
          %v1005 = vand.u32 %v867, 4294901760
          %v1006 = vsub.f32 %v867, %v1005
          %v1007 = vand.u32 %v1006, 4294901760
          %v1008 = vsub.f32 %v1006, %v1007
          %v1009 = vand.u32 %v1008, 4294901760
          %1010 = vmatpush1.msra.mxu0 %v1009
          %1011 = vmatprep.subr.mxu0 0.0
          %v1012 = vand.u32 %v868, 4294901760
          %v1013 = vsub.f32 %v868, %v1012
          %v1014 = vand.u32 %v1013, 4294901760
          %v1015 = vsub.f32 %v1013, %v1014
          %v1016 = vand.u32 %v1015, 4294901760
          %1017 = vmatpush1.msra.mxu0 %v1016
          %1018 = vmatprep.subr.mxu0 0.0
          %v1019 = vand.u32 %v869, 4294901760
          %v1020 = vsub.f32 %v869, %v1019
          %v1021 = vand.u32 %v1020, 4294901760
          %v1022 = vsub.f32 %v1020, %v1021
          %v1023 = vand.u32 %v1022, 4294901760
          %1024 = vmatpush1.msra.mxu0 %v1023
          %1025 = vmatprep.subr.mxu0 0.0
          %v1026 = vand.u32 %v870, 4294901760
          %v1027 = vsub.f32 %v870, %v1026
          %v1028 = vand.u32 %v1027, 4294901760
          %v1029 = vsub.f32 %v1027, %v1028
          %v1030 = vand.u32 %v1029, 4294901760
          %1031 = vmatpush1.msra.mxu0 %v1030
          %1032 = vmatprep.subr.mxu0 0.0
          %v1033 = vand.u32 %v871, 4294901760
          %v1034 = vsub.f32 %v871, %v1033
          %v1035 = vand.u32 %v1034, 4294901760
          %v1036 = vsub.f32 %v1034, %v1035
          %v1037 = vand.u32 %v1036, 4294901760
          %1038 = vmatpush1.msra.mxu0 %v1037
          %1039 = vmatprep.subr.mxu0 0.0
          %v1040 = vand.u32 %v872, 4294901760
          %v1041 = vsub.f32 %v872, %v1040
          %v1042 = vand.u32 %v1041, 4294901760
          %v1043 = vsub.f32 %v1041, %v1042
          %v1044 = vand.u32 %v1043, 4294901760
          %1045 = vmatpush1.msra.mxu0 %v1044
          %1046 = vmatprep.subr.mxu0 0.0
          %v1047 = vand.u32 %v873, 4294901760
          %v1048 = vsub.f32 %v873, %v1047
          %v1049 = vand.u32 %v1048, 4294901760
          %v1050 = vsub.f32 %v1048, %v1049
          %v1051 = vand.u32 %v1050, 4294901760
          %1052 = vmatpush1.msra.mxu0 %v1051
          %1053 = vmatprep.subr.mxu0 0.0
          %v1054 = vand.u32 %v874, 4294901760
          %v1055 = vsub.f32 %v874, %v1054
          %v1056 = vand.u32 %v1055, 4294901760
          %v1057 = vsub.f32 %v1055, %v1056
          %v1058 = vand.u32 %v1057, 4294901760
          %1059 = vmatpush1.msra.mxu0 %v1058
          %1060 = vmatprep.subr.mxu0 0.0
          %v1061 = vand.u32 %v875, 4294901760
          %v1062 = vsub.f32 %v875, %v1061
          %v1063 = vand.u32 %v1062, 4294901760
          %v1064 = vsub.f32 %v1062, %v1063
          %v1065 = vand.u32 %v1064, 4294901760
          %1066 = vmatpush1.msra.mxu0 %v1065
          %1067 = vmatprep.subr.mxu0 0.0
          %v1068 = vand.u32 %v876, 4294901760
          %v1069 = vsub.f32 %v876, %v1068
          %v1070 = vand.u32 %v1069, 4294901760
          %v1071 = vsub.f32 %v1069, %v1070
          %v1072 = vand.u32 %v1071, 4294901760
          %1073 = vmatpush1.msra.mxu0 %v1072
          %1074 = vmatprep.subr.mxu0 0.0
          %v1075 = vand.u32 %v877, 4294901760
          %v1076 = vsub.f32 %v877, %v1075
          %v1077 = vand.u32 %v1076, 4294901760
          %v1078 = vsub.f32 %v1076, %v1077
          %v1079 = vand.u32 %v1078, 4294901760
          %1080 = vmatpush1.msra.mxu0 %v1079
          %1081 = vmatprep.subr.mxu0 0.0
          %1082 = vmatpush1.msra.mxu0 0.0
          %1083 = vmatprep.subr.mxu0 0.0
          %1084 = vmatpush1.msra.mxu0 0.0
          %1085 = vmatprep.subr.mxu0 0.0
          %1086 = vmatpush1.msra.mxu0 0.0
          %1087 = vmatprep.subr.mxu0 0.0
          %1088 = vmatpush1.msra.mxu0 0.0
          %1089 = vmatprep.subr.mxu0 0.0
          %1090 = vmatpush1.msra.mxu0 0.0
          %1091 = vmatprep.subr.mxu0 0.0
          %1092 = vmatpush1.msra.mxu0 0.0
          %1093 = vmatprep.subr.mxu0 0.0
          %1094 = vmatpush1.msra.mxu0 0.0
          %1095 = vmatprep.subr.mxu0 0.0
          %1096 = vmatpush1.msra.mxu0 0.0
          %1097 = vmatprep.subr.mxu0 0.0
          %1098 = vmatpush1.msra.mxu0 0.0
          %1099 = vmatprep.subr.mxu0 0.0
          %1100 = vmatpush1.msra.mxu0 0.0
          %1101 = vmatprep.subr.mxu0 0.0
          %1102 = vmatpush1.msra.mxu0 0.0
          %1103 = vmatprep.subr.mxu0 0.0
          %1104 = vmatpush1.msra.mxu0 0.0
          %1105 = vmatprep.subr.mxu0 0.0
          %1106 = vmatpush1.msra.mxu0 0.0
          %1107 = vmatprep.subr.mxu0 0.0
          %1108 = vmatpush1.msra.mxu0 0.0
          %1109 = vmatprep.subr.mxu0 0.0
          %1110 = vmatpush1.msra.mxu0 0.0
          %1111 = vmatprep.subr.mxu0 0.0
          %1112 = vmatpush1.msra.mxu0 0.0
          %1113 = vmatprep.mubr.f32.mxu0 0.0
          %v1114 = vand.u32 %v861, 4294901760
          %1115 = vmatmul.mubr.f32.gmra.mrb[0].mxu0 %v1114
          %v1116 = vpop.f32.mrb[0].mxu0
          %v1117 = vadd.f32 %v966, %v1116
          %v1118 = vpop.f32.mrb[0].mxu0
          %1119 = vdwg.mxu0
          %1120 = vmatprep.subr.mxu0 0.0
          %v1121 = vand.u32 %v862, 4294901760
          %v1122 = vsub.f32 %v862, %v1121
          %1123 = vmatpush1.msra.mxu0 %v1122
          %1124 = vmatprep.subr.mxu0 0.0
          %v1125 = vand.u32 %v863, 4294901760
          %v1126 = vsub.f32 %v863, %v1125
          %1127 = vmatpush1.msra.mxu0 %v1126
          %1128 = vmatprep.subr.mxu0 0.0
          %v1129 = vand.u32 %v864, 4294901760
          %v1130 = vsub.f32 %v864, %v1129
          %1131 = vmatpush1.msra.mxu0 %v1130
          %1132 = vmatprep.subr.mxu0 0.0
          %v1133 = vand.u32 %v865, 4294901760
          %v1134 = vsub.f32 %v865, %v1133
          %1135 = vmatpush1.msra.mxu0 %v1134
          %1136 = vmatprep.subr.mxu0 0.0
          %v1137 = vand.u32 %v866, 4294901760
          %v1138 = vsub.f32 %v866, %v1137
          %1139 = vmatpush1.msra.mxu0 %v1138
          %1140 = vmatprep.subr.mxu0 0.0
          %v1141 = vand.u32 %v867, 4294901760
          %v1142 = vsub.f32 %v867, %v1141
          %1143 = vmatpush1.msra.mxu0 %v1142
          %1144 = vmatprep.subr.mxu0 0.0
          %v1145 = vand.u32 %v868, 4294901760
          %v1146 = vsub.f32 %v868, %v1145
          %1147 = vmatpush1.msra.mxu0 %v1146
          %1148 = vmatprep.subr.mxu0 0.0
          %v1149 = vand.u32 %v869, 4294901760
          %v1150 = vsub.f32 %v869, %v1149
          %1151 = vmatpush1.msra.mxu0 %v1150
          %1152 = vmatprep.subr.mxu0 0.0
          %v1153 = vand.u32 %v870, 4294901760
          %v1154 = vsub.f32 %v870, %v1153
          %1155 = vmatpush1.msra.mxu0 %v1154
          %1156 = vmatprep.subr.mxu0 0.0
          %v1157 = vand.u32 %v871, 4294901760
          %v1158 = vsub.f32 %v871, %v1157
          %1159 = vmatpush1.msra.mxu0 %v1158
          %1160 = vmatprep.subr.mxu0 0.0
          %v1161 = vand.u32 %v872, 4294901760
          %v1162 = vsub.f32 %v872, %v1161
          %1163 = vmatpush1.msra.mxu0 %v1162
          %1164 = vmatprep.subr.mxu0 0.0
          %v1165 = vand.u32 %v873, 4294901760
          %v1166 = vsub.f32 %v873, %v1165
          %1167 = vmatpush1.msra.mxu0 %v1166
          %1168 = vmatprep.subr.mxu0 0.0
          %v1169 = vand.u32 %v874, 4294901760
          %v1170 = vsub.f32 %v874, %v1169
          %1171 = vmatpush1.msra.mxu0 %v1170
          %1172 = vmatprep.subr.mxu0 0.0
          %v1173 = vand.u32 %v875, 4294901760
          %v1174 = vsub.f32 %v875, %v1173
          %1175 = vmatpush1.msra.mxu0 %v1174
          %1176 = vmatprep.subr.mxu0 0.0
          %v1177 = vand.u32 %v876, 4294901760
          %v1178 = vsub.f32 %v876, %v1177
          %1179 = vmatpush1.msra.mxu0 %v1178
          %1180 = vmatprep.subr.mxu0 0.0
          %v1181 = vand.u32 %v877, 4294901760
          %v1182 = vsub.f32 %v877, %v1181
          %1183 = vmatpush1.msra.mxu0 %v1182
          %1184 = vmatprep.subr.mxu0 0.0
          %1185 = vmatpush1.msra.mxu0 0.0
          %1186 = vmatprep.subr.mxu0 0.0
          %1187 = vmatpush1.msra.mxu0 0.0
          %1188 = vmatprep.subr.mxu0 0.0
          %1189 = vmatpush1.msra.mxu0 0.0
          %1190 = vmatprep.subr.mxu0 0.0
          %1191 = vmatpush1.msra.mxu0 0.0
          %1192 = vmatprep.subr.mxu0 0.0
          %1193 = vmatpush1.msra.mxu0 0.0
          %1194 = vmatprep.subr.mxu0 0.0
          %1195 = vmatpush1.msra.mxu0 0.0
          %1196 = vmatprep.subr.mxu0 0.0
          %1197 = vmatpush1.msra.mxu0 0.0
          %1198 = vmatprep.subr.mxu0 0.0
          %1199 = vmatpush1.msra.mxu0 0.0
          %1200 = vmatprep.subr.mxu0 0.0
          %1201 = vmatpush1.msra.mxu0 0.0
          %1202 = vmatprep.subr.mxu0 0.0
          %1203 = vmatpush1.msra.mxu0 0.0
          %1204 = vmatprep.subr.mxu0 0.0
          %1205 = vmatpush1.msra.mxu0 0.0
          %1206 = vmatprep.subr.mxu0 0.0
          %1207 = vmatpush1.msra.mxu0 0.0
          %1208 = vmatprep.subr.mxu0 0.0
          %1209 = vmatpush1.msra.mxu0 0.0
          %1210 = vmatprep.subr.mxu0 0.0
          %1211 = vmatpush1.msra.mxu0 0.0
          %1212 = vmatprep.subr.mxu0 0.0
          %1213 = vmatpush1.msra.mxu0 0.0
          %1214 = vmatprep.subr.mxu0 0.0
          %1215 = vmatpush1.msra.mxu0 0.0
          %1216 = vmatprep.mubr.f32.mxu0 0.0
          %v1217 = vand.u32 %v861, 4294901760
          %v1218 = vsub.f32 %v861, %v1217
          %1219 = vmatmul.mubr.f32.gmra.mrb[0].mxu0 %v1218
          %v1220 = vpop.f32.mrb[0].mxu0
          %v1221 = vadd.f32 %v1117, %v1220
          %v1222 = vpop.f32.mrb[0].mxu0
          %1223 = vdwg.mxu0
          %1224 = vmatprep.subr.mxu0 0.0
          %v1225 = vand.u32 %v862, 4294901760
          %1226 = vmatpush1.msra.mxu0 %v1225
          %1227 = vmatprep.subr.mxu0 0.0
          %v1228 = vand.u32 %v863, 4294901760
          %1229 = vmatpush1.msra.mxu0 %v1228
          %1230 = vmatprep.subr.mxu0 0.0
          %v1231 = vand.u32 %v864, 4294901760
          %1232 = vmatpush1.msra.mxu0 %v1231
          %1233 = vmatprep.subr.mxu0 0.0
          %v1234 = vand.u32 %v865, 4294901760
          %1235 = vmatpush1.msra.mxu0 %v1234
          %1236 = vmatprep.subr.mxu0 0.0
          %v1237 = vand.u32 %v866, 4294901760
          %1238 = vmatpush1.msra.mxu0 %v1237
          %1239 = vmatprep.subr.mxu0 0.0
          %v1240 = vand.u32 %v867, 4294901760
          %1241 = vmatpush1.msra.mxu0 %v1240
          %1242 = vmatprep.subr.mxu0 0.0
          %v1243 = vand.u32 %v868, 4294901760
          %1244 = vmatpush1.msra.mxu0 %v1243
          %1245 = vmatprep.subr.mxu0 0.0
          %v1246 = vand.u32 %v869, 4294901760
          %1247 = vmatpush1.msra.mxu0 %v1246
          %1248 = vmatprep.subr.mxu0 0.0
          %v1249 = vand.u32 %v870, 4294901760
          %1250 = vmatpush1.msra.mxu0 %v1249
          %1251 = vmatprep.subr.mxu0 0.0
          %v1252 = vand.u32 %v871, 4294901760
          %1253 = vmatpush1.msra.mxu0 %v1252
          %1254 = vmatprep.subr.mxu0 0.0
          %v1255 = vand.u32 %v872, 4294901760
          %1256 = vmatpush1.msra.mxu0 %v1255
          %1257 = vmatprep.subr.mxu0 0.0
          %v1258 = vand.u32 %v873, 4294901760
          %1259 = vmatpush1.msra.mxu0 %v1258
          %1260 = vmatprep.subr.mxu0 0.0
          %v1261 = vand.u32 %v874, 4294901760
          %1262 = vmatpush1.msra.mxu0 %v1261
          %1263 = vmatprep.subr.mxu0 0.0
          %v1264 = vand.u32 %v875, 4294901760
          %1265 = vmatpush1.msra.mxu0 %v1264
          %1266 = vmatprep.subr.mxu0 0.0
          %v1267 = vand.u32 %v876, 4294901760
          %1268 = vmatpush1.msra.mxu0 %v1267
          %1269 = vmatprep.subr.mxu0 0.0
          %v1270 = vand.u32 %v877, 4294901760
          %1271 = vmatpush1.msra.mxu0 %v1270
          %1272 = vmatprep.subr.mxu0 0.0
          %1273 = vmatpush1.msra.mxu0 0.0
          %1274 = vmatprep.subr.mxu0 0.0
          %1275 = vmatpush1.msra.mxu0 0.0
          %1276 = vmatprep.subr.mxu0 0.0
          %1277 = vmatpush1.msra.mxu0 0.0
          %1278 = vmatprep.subr.mxu0 0.0
          %1279 = vmatpush1.msra.mxu0 0.0
          %1280 = vmatprep.subr.mxu0 0.0
          %1281 = vmatpush1.msra.mxu0 0.0
          %1282 = vmatprep.subr.mxu0 0.0
          %1283 = vmatpush1.msra.mxu0 0.0
          %1284 = vmatprep.subr.mxu0 0.0
          %1285 = vmatpush1.msra.mxu0 0.0
          %1286 = vmatprep.subr.mxu0 0.0
          %1287 = vmatpush1.msra.mxu0 0.0
          %1288 = vmatprep.subr.mxu0 0.0
          %1289 = vmatpush1.msra.mxu0 0.0
          %1290 = vmatprep.subr.mxu0 0.0
          %1291 = vmatpush1.msra.mxu0 0.0
          %1292 = vmatprep.subr.mxu0 0.0
          %1293 = vmatpush1.msra.mxu0 0.0
          %1294 = vmatprep.subr.mxu0 0.0
          %1295 = vmatpush1.msra.mxu0 0.0
          %1296 = vmatprep.subr.mxu0 0.0
          %1297 = vmatpush1.msra.mxu0 0.0
          %1298 = vmatprep.subr.mxu0 0.0
          %1299 = vmatpush1.msra.mxu0 0.0
          %1300 = vmatprep.subr.mxu0 0.0
          %1301 = vmatpush1.msra.mxu0 0.0
          %1302 = vmatprep.subr.mxu0 0.0
          %1303 = vmatpush1.msra.mxu0 0.0
          %1304 = vmatprep.mubr.f32.mxu0 0.0
          %v1305 = vand.u32 %v861, 4294901760
          %v1306 = vsub.f32 %v861, %v1305
          %v1307 = vand.u32 %v1306, 4294901760
          %1308 = vmatmul.mubr.f32.gmra.mrb[0].mxu0 %v1307
          %v1309 = vpop.f32.mrb[0].mxu0
          %v1310 = vadd.f32 %v1221, %v1309
          %v1311 = vpop.f32.mrb[0].mxu0
          %1312 = vdwg.mxu0
          %1313 = vmatprep.subr.mxu0 0.0
          %v1314 = vand.u32 %v862, 4294901760
          %v1315 = vsub.f32 %v862, %v1314
          %v1316 = vand.u32 %v1315, 4294901760
          %1317 = vmatpush1.msra.mxu0 %v1316
          %1318 = vmatprep.subr.mxu0 0.0
          %v1319 = vand.u32 %v863, 4294901760
          %v1320 = vsub.f32 %v863, %v1319
          %v1321 = vand.u32 %v1320, 4294901760
          %1322 = vmatpush1.msra.mxu0 %v1321
          %1323 = vmatprep.subr.mxu0 0.0
          %v1324 = vand.u32 %v864, 4294901760
          %v1325 = vsub.f32 %v864, %v1324
          %v1326 = vand.u32 %v1325, 4294901760
          %1327 = vmatpush1.msra.mxu0 %v1326
          %1328 = vmatprep.subr.mxu0 0.0
          %v1329 = vand.u32 %v865, 4294901760
          %v1330 = vsub.f32 %v865, %v1329
          %v1331 = vand.u32 %v1330, 4294901760
          %1332 = vmatpush1.msra.mxu0 %v1331
          %1333 = vmatprep.subr.mxu0 0.0
          %v1334 = vand.u32 %v866, 4294901760
          %v1335 = vsub.f32 %v866, %v1334
          %v1336 = vand.u32 %v1335, 4294901760
          %1337 = vmatpush1.msra.mxu0 %v1336
          %1338 = vmatprep.subr.mxu0 0.0
          %v1339 = vand.u32 %v867, 4294901760
          %v1340 = vsub.f32 %v867, %v1339
          %v1341 = vand.u32 %v1340, 4294901760
          %1342 = vmatpush1.msra.mxu0 %v1341
          %1343 = vmatprep.subr.mxu0 0.0
          %v1344 = vand.u32 %v868, 4294901760
          %v1345 = vsub.f32 %v868, %v1344
          %v1346 = vand.u32 %v1345, 4294901760
          %1347 = vmatpush1.msra.mxu0 %v1346
          %1348 = vmatprep.subr.mxu0 0.0
          %v1349 = vand.u32 %v869, 4294901760
          %v1350 = vsub.f32 %v869, %v1349
          %v1351 = vand.u32 %v1350, 4294901760
          %1352 = vmatpush1.msra.mxu0 %v1351
          %1353 = vmatprep.subr.mxu0 0.0
          %v1354 = vand.u32 %v870, 4294901760
          %v1355 = vsub.f32 %v870, %v1354
          %v1356 = vand.u32 %v1355, 4294901760
          %1357 = vmatpush1.msra.mxu0 %v1356
          %1358 = vmatprep.subr.mxu0 0.0
          %v1359 = vand.u32 %v871, 4294901760
          %v1360 = vsub.f32 %v871, %v1359
          %v1361 = vand.u32 %v1360, 4294901760
          %1362 = vmatpush1.msra.mxu0 %v1361
          %1363 = vmatprep.subr.mxu0 0.0
          %v1364 = vand.u32 %v872, 4294901760
          %v1365 = vsub.f32 %v872, %v1364
          %v1366 = vand.u32 %v1365, 4294901760
          %1367 = vmatpush1.msra.mxu0 %v1366
          %1368 = vmatprep.subr.mxu0 0.0
          %v1369 = vand.u32 %v873, 4294901760
          %v1370 = vsub.f32 %v873, %v1369
          %v1371 = vand.u32 %v1370, 4294901760
          %1372 = vmatpush1.msra.mxu0 %v1371
          %1373 = vmatprep.subr.mxu0 0.0
          %v1374 = vand.u32 %v874, 4294901760
          %v1375 = vsub.f32 %v874, %v1374
          %v1376 = vand.u32 %v1375, 4294901760
          %1377 = vmatpush1.msra.mxu0 %v1376
          %1378 = vmatprep.subr.mxu0 0.0
          %v1379 = vand.u32 %v875, 4294901760
          %v1380 = vsub.f32 %v875, %v1379
          %v1381 = vand.u32 %v1380, 4294901760
          %1382 = vmatpush1.msra.mxu0 %v1381
          %1383 = vmatprep.subr.mxu0 0.0
          %v1384 = vand.u32 %v876, 4294901760
          %v1385 = vsub.f32 %v876, %v1384
          %v1386 = vand.u32 %v1385, 4294901760
          %1387 = vmatpush1.msra.mxu0 %v1386
          %1388 = vmatprep.subr.mxu0 0.0
          %v1389 = vand.u32 %v877, 4294901760
          %v1390 = vsub.f32 %v877, %v1389
          %v1391 = vand.u32 %v1390, 4294901760
          %1392 = vmatpush1.msra.mxu0 %v1391
          %1393 = vmatprep.subr.mxu0 0.0
          %1394 = vmatpush1.msra.mxu0 0.0
          %1395 = vmatprep.subr.mxu0 0.0
          %1396 = vmatpush1.msra.mxu0 0.0
          %1397 = vmatprep.subr.mxu0 0.0
          %1398 = vmatpush1.msra.mxu0 0.0
          %1399 = vmatprep.subr.mxu0 0.0
          %1400 = vmatpush1.msra.mxu0 0.0
          %1401 = vmatprep.subr.mxu0 0.0
          %1402 = vmatpush1.msra.mxu0 0.0
          %1403 = vmatprep.subr.mxu0 0.0
          %1404 = vmatpush1.msra.mxu0 0.0
          %1405 = vmatprep.subr.mxu0 0.0
          %1406 = vmatpush1.msra.mxu0 0.0
          %1407 = vmatprep.subr.mxu0 0.0
          %1408 = vmatpush1.msra.mxu0 0.0
          %1409 = vmatprep.subr.mxu0 0.0
          %1410 = vmatpush1.msra.mxu0 0.0
          %1411 = vmatprep.subr.mxu0 0.0
          %1412 = vmatpush1.msra.mxu0 0.0
          %1413 = vmatprep.subr.mxu0 0.0
          %1414 = vmatpush1.msra.mxu0 0.0
          %1415 = vmatprep.subr.mxu0 0.0
          %1416 = vmatpush1.msra.mxu0 0.0
          %1417 = vmatprep.subr.mxu0 0.0
          %1418 = vmatpush1.msra.mxu0 0.0
          %1419 = vmatprep.subr.mxu0 0.0
          %1420 = vmatpush1.msra.mxu0 0.0
          %1421 = vmatprep.subr.mxu0 0.0
          %1422 = vmatpush1.msra.mxu0 0.0
          %1423 = vmatprep.subr.mxu0 0.0
          %1424 = vmatpush1.msra.mxu0 0.0
          %1425 = vmatprep.mubr.f32.mxu0 0.0
          %v1426 = vand.u32 %v861, 4294901760
          %1427 = vmatmul.mubr.f32.gmra.mrb[0].mxu0 %v1426
          %v1428 = vpop.f32.mrb[0].mxu0
          %v1429 = vadd.f32 %v1310, %v1428
          %v1430 = vpop.f32.mrb[0].mxu0
          %1431 = vdwg.mxu0
          %1432 = vmatprep.subr.mxu0 0.0
          %v1433 = vand.u32 %v862, 4294901760
          %1434 = vmatpush1.msra.mxu0 %v1433
          %1435 = vmatprep.subr.mxu0 0.0
          %v1436 = vand.u32 %v863, 4294901760
          %1437 = vmatpush1.msra.mxu0 %v1436
          %1438 = vmatprep.subr.mxu0 0.0
          %v1439 = vand.u32 %v864, 4294901760
          %1440 = vmatpush1.msra.mxu0 %v1439
          %1441 = vmatprep.subr.mxu0 0.0
          %v1442 = vand.u32 %v865, 4294901760
          %1443 = vmatpush1.msra.mxu0 %v1442
          %1444 = vmatprep.subr.mxu0 0.0
          %v1445 = vand.u32 %v866, 4294901760
          %1446 = vmatpush1.msra.mxu0 %v1445
          %1447 = vmatprep.subr.mxu0 0.0
          %v1448 = vand.u32 %v867, 4294901760
          %1449 = vmatpush1.msra.mxu0 %v1448
          %1450 = vmatprep.subr.mxu0 0.0
          %v1451 = vand.u32 %v868, 4294901760
          %1452 = vmatpush1.msra.mxu0 %v1451
          %1453 = vmatprep.subr.mxu0 0.0
          %v1454 = vand.u32 %v869, 4294901760
          %1455 = vmatpush1.msra.mxu0 %v1454
          %1456 = vmatprep.subr.mxu0 0.0
          %v1457 = vand.u32 %v870, 4294901760
          %1458 = vmatpush1.msra.mxu0 %v1457
          %1459 = vmatprep.subr.mxu0 0.0
          %v1460 = vand.u32 %v871, 4294901760
          %1461 = vmatpush1.msra.mxu0 %v1460
          %1462 = vmatprep.subr.mxu0 0.0
          %v1463 = vand.u32 %v872, 4294901760
          %1464 = vmatpush1.msra.mxu0 %v1463
          %1465 = vmatprep.subr.mxu0 0.0
          %v1466 = vand.u32 %v873, 4294901760
          %1467 = vmatpush1.msra.mxu0 %v1466
          %1468 = vmatprep.subr.mxu0 0.0
          %v1469 = vand.u32 %v874, 4294901760
          %1470 = vmatpush1.msra.mxu0 %v1469
          %1471 = vmatprep.subr.mxu0 0.0
          %v1472 = vand.u32 %v875, 4294901760
          %1473 = vmatpush1.msra.mxu0 %v1472
          %1474 = vmatprep.subr.mxu0 0.0
          %v1475 = vand.u32 %v876, 4294901760
          %1476 = vmatpush1.msra.mxu0 %v1475
          %1477 = vmatprep.subr.mxu0 0.0
          %v1478 = vand.u32 %v877, 4294901760
          %1479 = vmatpush1.msra.mxu0 %v1478
          %1480 = vmatprep.subr.mxu0 0.0
          %1481 = vmatpush1.msra.mxu0 0.0
          %1482 = vmatprep.subr.mxu0 0.0
          %1483 = vmatpush1.msra.mxu0 0.0
          %1484 = vmatprep.subr.mxu0 0.0
          %1485 = vmatpush1.msra.mxu0 0.0
          %1486 = vmatprep.subr.mxu0 0.0
          %1487 = vmatpush1.msra.mxu0 0.0
          %1488 = vmatprep.subr.mxu0 0.0
          %1489 = vmatpush1.msra.mxu0 0.0
          %1490 = vmatprep.subr.mxu0 0.0
          %1491 = vmatpush1.msra.mxu0 0.0
          %1492 = vmatprep.subr.mxu0 0.0
          %1493 = vmatpush1.msra.mxu0 0.0
          %1494 = vmatprep.subr.mxu0 0.0
          %1495 = vmatpush1.msra.mxu0 0.0
          %1496 = vmatprep.subr.mxu0 0.0
          %1497 = vmatpush1.msra.mxu0 0.0
          %1498 = vmatprep.subr.mxu0 0.0
          %1499 = vmatpush1.msra.mxu0 0.0
          %1500 = vmatprep.subr.mxu0 0.0
          %1501 = vmatpush1.msra.mxu0 0.0
          %1502 = vmatprep.subr.mxu0 0.0
          %1503 = vmatpush1.msra.mxu0 0.0
          %1504 = vmatprep.subr.mxu0 0.0
          %1505 = vmatpush1.msra.mxu0 0.0
          %1506 = vmatprep.subr.mxu0 0.0
          %1507 = vmatpush1.msra.mxu0 0.0
          %1508 = vmatprep.subr.mxu0 0.0
          %1509 = vmatpush1.msra.mxu0 0.0
          %1510 = vmatprep.subr.mxu0 0.0
          %1511 = vmatpush1.msra.mxu0 0.0
          %1512 = vmatprep.mubr.f32.mxu0 0.0
          %v1513 = vand.u32 %v861, 4294901760
          %1514 = vmatmul.mubr.f32.gmra.mrb[0].mxu0 %v1513
          %v1515 = vpop.f32.mrb[0].mxu0
          %v1516 = vadd.f32 %v1429, %v1515
          %v1517 = vpop.f32.mrb[0].mxu0
          %1518 = vdwg.mxu0
          %1519 = vst [vmem:[%s200] sm:$0x1] %v1516
        $region44: #{tpu_custom_call.1} parent=31 // pred_fallthru
          _
        %s1520 = sand.u32 %s108, 1
        %s1521 = scalar_lea.sflag [#allocation5], %s1520
        %s1522 = sand.u32 %s108, 1
        %s1523 = scalar_lea.vmem [#allocation6], %s1522
        // Predicated region
        $region45: #{tpu_custom_call.1} parent=31 // pred_check
          %p1524 = pneg %p118
        $region46: #{tpu_custom_call.1} parent=31 // pred_check_branch
          %1526 = sbr.rel (%p1524) target = $region48
        $region47: #{tpu_custom_call.1} parent=31 // pred_region
          %s1528 = ssub.s32 16, 16
          %1529 = vsyncadd %s1521, %s1528
          %s1530 = smul.addr %s22, 16
          %s1531 = scalar_lea.hbm %s3, %s1530
          %s1533 = sshll.u32 %s1523, 4
          %s1534 = int_to_ptr.vmem [resolvable:$true] %s1533
          %1536 = dma.vmem_to_hbm [thread:$0]  %s1534, 16, %s1531, %s1521
        $region48: #{tpu_custom_call.1} parent=31 // pred_fallthru
          _
      $region32: #{tpu_custom_call.1} parent=5 // pred_fallthru
        _
      %p1537 = scmp.le.s32.totalorder 2, %s13
      // Predicated region
      $region49: #{tpu_custom_call.1} parent=5 // pred_check
        %p1538 = pneg %p1537
      $region50: #{tpu_custom_call.1} parent=5 // pred_check_branch
        %1540 = sbr.rel (%p1538) target = $region52
      $region51: #{tpu_custom_call.1} parent=5 // pred_region
        %s1541 = ssub.s32 %s13, 2
        // Predicated region
        $region53: #{tpu_custom_call.1} parent=51 // pred_check
          %p1542 = pneg %p124
        $region54: #{tpu_custom_call.1} parent=51 // pred_check_branch
          %1544 = sbr.rel (%p1542) target = $region56
        $region55: #{tpu_custom_call.1} parent=51 // pred_region
          %s1545 = sand.u32 %s109, 1
          %s1546 = scalar_lea.sflag [#allocation5], %s1545
          %s1547 = sand.u32 %s109, 1
          %s1548 = scalar_lea.vmem [#allocation6], %s1547
          %1549 = dma.done %s1546, 16
        $region56: #{tpu_custom_call.1} parent=51 // pred_fallthru
          _
      $region52: #{tpu_custom_call.1} parent=5 // pred_fallthru
        _
    $region6: #{tpu_custom_call.1} parent=1 // loop_footer
      %s17 = sadd.s32 1, %s13
    $region7: #{tpu_custom_call.1} parent=1 // loop_footer_branch
      %12 = sbr.rel target = $region3
    $region8: #{tpu_custom_call.1} parent=1 // loop_exit
      _
    %1550 = vsyncpa [#allocation4], 1
    %s1551 = scalar_lea.sflag [#allocation4], 1
    %1552 = vsyncpa %s1551, 1
    %1553 = vsyncpa [#allocation5], 1
    %s1554 = scalar_lea.sflag [#allocation5], 1
    %1555 = vsyncpa %s1554, 1

</llo_original>
